<compile_context>
chip_gen: v5e
topology: v5e:2x2
jax: 0.10.0
libtpu: 0.0.40
codegen_flags: <defaults>
</compile_context>

<pallas_src>
import functools

import jax
import jax.numpy as jnp
from jax.experimental import pallas as pl
from jax.experimental.pallas import tpu as pltpu


def _round_up(x, m):
    return ((x + m - 1) // m) * m


def _pick_tile_b(B, cap=1024):
    """Batch tile: multiple of 16, <= cap, and ~half the padded batch so the
    grid has >= 2 steps (keeps both v7x TensorCores busy) with minimal pad."""
    b16 = _round_up(B, 16)
    if b16 <= 16:
        return 16
    if b16 <= 2 * cap:
        return _round_up((b16 + 1) // 2, 16)
    return cap


def _resident_spec(block_shape, index_map):
    """Constant-index-map spec, single-buffered (weights stay VMEM-resident)."""
    try:
        return pl.BlockSpec(block_shape, index_map, pipeline_mode=pl.Buffered(1))
    except TypeError:  # older jax without pipeline_mode: fall back to default
        return pl.BlockSpec(block_shape, index_map)


def generator_mlp_kernel(x_ref, w1_ref, w2_ref, b2_ref, w3_ref, b3_ref, out_ref):
    # Layer 1: x = [z | one-hot(label)], W1_aug = [W1_z ; emb@W1_e + b1], so a
    # single K=256 MXU matmul reproduces cat([z, emb(label)]) @ W1 + b1.
    h1 = jnp.dot(x_ref[...], w1_ref[...], preferred_element_type=jnp.float32)
    h1 = jnp.maximum(h1, 0.0)                                        # ReLU (f32)

    # Layer 2
    h2 = jnp.dot(h1.astype(jnp.bfloat16), w2_ref[...],
                 preferred_element_type=jnp.float32)
    h2 = jnp.maximum(h2 + b2_ref[...], 0.0)                          # ReLU (f32)

    # Layer 3 + tanh (f32 for accuracy near +/-1), cast on store.
    h3 = jnp.dot(h2.astype(jnp.bfloat16), w3_ref[...],
                 preferred_element_type=jnp.float32)
    out_ref[...] = jnp.tanh(h3 + b3_ref[...]).astype(out_ref.dtype)


def generator_forward(z, labels, kparams, out_dtype=jnp.float32):
    """z: (B, nz) float32, labels: (B,) int32 -> (B, 1, 28, 28) out_dtype."""
    B, nz = z.shape
    zcols = kparams["zcols"]                 # 128 (where one-hot block starts)
    num_classes = kparams["num_classes"]
    k_aug = kparams["w1"].shape[0]           # 256
    h1_dim = kparams["w1"].shape[1]          # 256
    h2_dim = kparams["w2"].shape[1]          # 512
    out_pad = kparams["w3"].shape[1]         # 896
    out_dim = kparams["out_dim"]             # 784

    tile_b = _pick_tile_b(B)
    B_pad = _round_up(B, tile_b)
    grid = (B_pad // tile_b,)

    # Augmented bf16 input: z in cols [0, nz), one-hot(label) in
    # cols [zcols, zcols + num_classes); everything else zero.
    x_aug = jnp.zeros((B_pad, k_aug), jnp.bfloat16)
    x_aug = x_aug.at[:B, :nz].set(z.astype(jnp.bfloat16))
    onehot = jax.nn.one_hot(labels, num_classes, dtype=jnp.bfloat16)
    x_aug = x_aug.at[:B, zcols:zcols + num_classes].set(onehot)

    weight_bytes = 2 * (kparams["w1"].size + kparams["w2"].size
                        + kparams["w3"].size) \
                 + 4 * (kparams["b2"].size + kparams["b3"].size)
    io_bytes = 2 * x_aug.size + jnp.dtype(out_dtype).itemsize * B_pad * out_pad
    cost = pl.CostEstimate(
        flops=2 * B_pad * (k_aug * h1_dim + h1_dim * h2_dim + h2_dim * out_pad),
        transcendentals=B_pad * out_pad,
        bytes_accessed=weight_bytes + io_bytes)

    out = pl.pallas_call(
        generator_mlp_kernel,
        out_shape=jax.ShapeDtypeStruct((B_pad, out_pad), out_dtype),
        grid=grid,
        in_specs=[
            pl.BlockSpec((tile_b, k_aug), lambda i: (i, 0)),     # x tile (dbl-buf)
            _resident_spec((k_aug, h1_dim), lambda i: (0, 0)),   # W1 aug
            _resident_spec((h1_dim, h2_dim), lambda i: (0, 0)),  # W2
            _resident_spec((1, h2_dim), lambda i: (0, 0)),       # b2
            _resident_spec((h2_dim, out_pad), lambda i: (0, 0)), # W3
            _resident_spec((1, out_pad), lambda i: (0, 0)),      # b3
        ],
        out_specs=pl.BlockSpec((tile_b, out_pad), lambda i: (i, 0)),
        compiler_params=pltpu.CompilerParams(
            dimension_semantics=("parallel",),      # batch axis: megacore-shardable
            vmem_limit_bytes=32 * 1024 * 1024),     # v5e default is 16 MiB
        cost_estimate=cost,
    )(x_aug, kparams["w1"], kparams["w2"], kparams["b2"],
      kparams["w3"], kparams["b3"])

    # Drop batch/feature padding, reshape to NCHW. Keep this whole function
    # under jit so the slice fuses instead of costing an extra HBM pass.
    return out[:B, :out_dim].reshape(-1, 1, 28, 28)


def init_params(key, nz=100, num_classes=10):
    """Raw f32 parameters mirroring the PyTorch module."""
    ks = jax.random.split(key, 7)
    scale = 0.02

    def dense(kw, fan_in, fan_out):
        return scale * jax.random.normal(kw, (fan_in, fan_out), jnp.float32)

    return {
        "emb": jax.random.normal(ks[0], (num_classes, nz), jnp.float32),
        "w1": dense(ks[1], nz * 2, 256),
        "b1": 0.01 * jax.random.normal(ks[2], (1, 256), jnp.float32),
        "w2": dense(ks[3], 256, 512),
        "b2": 0.01 * jax.random.normal(ks[4], (1, 512), jnp.float32),
        "w3": dense(ks[5], 512, 784),
        "b3": 0.01 * jax.random.normal(ks[6], (1, 784), jnp.float32),
    }


def prepare_params(raw, nz=100):
    """Fold emb/W1e/b1 into an augmented (256,256) W1, pad lanes, cast bf16."""
    num_classes = raw["emb"].shape[0]
    w1 = raw["w1"]                               # (2*nz, 256)
    w1z, w1e = w1[:nz], w1[nz:]
    # one-hot(label) @ (emb @ W1e + b1) == emb[label] @ W1e + b1
    # (each one-hot row has exactly one 1), so b1 disappears from the kernel.
    emb_proj = raw["emb"] @ w1e + raw["b1"]      # (num_classes, 256) f32

    zcols = _round_up(nz, 128)                   # 100 -> 128
    k_aug = _round_up(zcols + num_classes, 128)  # 138 -> 256 (fills 256-deep MXU)
    out_dim = raw["w3"].shape[1]                 # 784
    out_pad = _round_up(out_dim, 128)            # 896

    w1_aug = jnp.zeros((k_aug, w1.shape[1]), jnp.float32)
    w1_aug = w1_aug.at[:nz].set(w1z)
    w1_aug = w1_aug.at[zcols:zcols + num_classes].set(emb_proj)

    w3_p = jnp.zeros((raw["w3"].shape[0], out_pad),
                     jnp.float32).at[:, :out_dim].set(raw["w3"])
    b3_p = jnp.zeros((1, out_pad), jnp.float32).at[:, :out_dim].set(raw["b3"])

    return {
        "w1": w1_aug.astype(jnp.bfloat16),       # (256, 256)
        "w2": raw["w2"].astype(jnp.bfloat16),    # (256, 512)
        "b2": raw["b2"],                         # f32 (1, 512)
        "w3": w3_p.astype(jnp.bfloat16),         # (512, 896)
        "b3": b3_p,                              # f32 (1, 896)
        "zcols": zcols,
        "num_classes": num_classes,
        "out_dim": out_dim,
    }


if __name__ == "__main__":
    nz = 100
    num_classes = 10
    batch = 8

    key = jax.random.PRNGKey(0)
    k_params, k_z, k_lbl = jax.random.split(key, 3)

    raw = init_params(k_params, nz=nz, num_classes=num_classes)
    kparams = prepare_params(raw, nz=nz)

    z = jax.random.normal(k_z, (batch, nz), jnp.float32)
    labels = jax.random.randint(k_lbl, (batch,), 0, num_classes, jnp.int32)

    # Jit end-to-end: pad/one-hot build + final slice fuse around pallas_call.
    gen = jax.jit(functools.partial(generator_forward, kparams=kparams))
    out = jax.block_until_ready(gen(z, labels))

    assert out.shape == (batch, 1, 28, 28), out.shape
    assert out.dtype == jnp.float32, out.dtype
    # tanh output must be in [-1, 1]
    assert bool(jnp.all(jnp.abs(out) <= 1.0))

    # Cross-check against plain-JAX f32 reference (loose tol: bf16 weights).
    emb = jnp.take(raw["emb"], labels, axis=0)
    x = jnp.concatenate([z, emb], axis=1)
    h1 = jnp.maximum(x @ raw["w1"] + raw["b1"], 0.0)
    h2 = jnp.maximum(h1 @ raw["w2"] + raw["b2"], 0.0)
    ref = jnp.tanh(h2 @ raw["w3"] + raw["b3"]).reshape(-1, 1, 28, 28)
    max_err = float(jnp.max(jnp.abs(out - ref)))
    assert max_err < 5e-2, max_err

    print("KERNEL_OK")
</pallas_src>

<mosaic_0001>
module attributes {stable_mosaic.version = 11 : i64} {
  func.func @generator_mlp_kernel(%arg0: i32, %arg1: memref<16x256xbf16, #tpu.memory_space<vmem>>, %arg2: memref<256x256xbf16, #tpu.memory_space<vmem>>, %arg3: memref<256x512xbf16, #tpu.memory_space<vmem>>, %arg4: memref<1x512xf32, #tpu.memory_space<vmem>>, %arg5: memref<512x896xbf16, #tpu.memory_space<vmem>>, %arg6: memref<1x896xf32, #tpu.memory_space<vmem>>, %arg7: memref<16x896xf32, #tpu.memory_space<vmem>>) attributes {dimension_semantics = [#tpu.dimension_semantics<parallel>], iteration_bounds = array<i64: 1>, scalar_prefetch = 0 : i64, scratch_operands = 0 : i64, tpu.core_type = #tpu.core_type<tc>, window_params = [{transform_indices = @transform_0, window_bounds = array<i64: 16, 256>}, {pipeline_mode = #tpu.pipeline_mode<synchronous>, transform_indices = @transform_1, window_bounds = array<i64: 256, 256>}, {pipeline_mode = #tpu.pipeline_mode<synchronous>, transform_indices = @transform_2, window_bounds = array<i64: 256, 512>}, {pipeline_mode = #tpu.pipeline_mode<synchronous>, transform_indices = @transform_3, window_bounds = array<i64: 1, 512>}, {pipeline_mode = #tpu.pipeline_mode<synchronous>, transform_indices = @transform_4, window_bounds = array<i64: 512, 896>}, {pipeline_mode = #tpu.pipeline_mode<synchronous>, transform_indices = @transform_5, window_bounds = array<i64: 1, 896>}, {transform_indices = @transform_6, window_bounds = array<i64: 16, 896>}]} {
    %c0 = arith.constant 0 : index
    %c0_0 = arith.constant 0 : index
    %0 = vector.load %arg1[%c0, %c0_0] : memref<16x256xbf16, #tpu.memory_space<vmem>>, vector<16x256xbf16>
    %c0_1 = arith.constant 0 : index
    %c0_2 = arith.constant 0 : index
    %1 = vector.load %arg2[%c0_1, %c0_2] : memref<256x256xbf16, #tpu.memory_space<vmem>>, vector<256x256xbf16>
    %cst = arith.constant dense<0.000000e+00> : vector<16x256xf32>
    %2 = tpu.matmul %0, %1, %cst {dimension_numbers = #tpu.dot_dimension_numbers<[1], [0], [0], [1], [0, 0, 1, 1], [], []>} : vector<16x256xbf16>, vector<256x256xbf16>, vector<16x256xf32> -> vector<16x256xf32>
    %cst_3 = arith.constant 0.000000e+00 : f32
    %3 = vector.broadcast %cst_3 : f32 to vector<16x256xf32>
    %4 = arith.maximumf %2, %3 : vector<16x256xf32>
    %5 = arith.truncf %4 : vector<16x256xf32> to vector<16x256xbf16>
    %c0_4 = arith.constant 0 : index
    %c0_5 = arith.constant 0 : index
    %6 = vector.load %arg3[%c0_4, %c0_5] : memref<256x512xbf16, #tpu.memory_space<vmem>>, vector<256x512xbf16>
    %cst_6 = arith.constant dense<0.000000e+00> : vector<16x512xf32>
    %7 = tpu.matmul %5, %6, %cst_6 {dimension_numbers = #tpu.dot_dimension_numbers<[1], [0], [0], [1], [0, 0, 1, 1], [], []>} : vector<16x256xbf16>, vector<256x512xbf16>, vector<16x512xf32> -> vector<16x512xf32>
    %c0_7 = arith.constant 0 : index
    %c0_8 = arith.constant 0 : index
    %8 = vector.load %arg4[%c0_7, %c0_8] : memref<1x512xf32, #tpu.memory_space<vmem>>, vector<1x512xf32>
    %9 = vector.broadcast %8 : vector<1x512xf32> to vector<16x512xf32>
    %10 = arith.addf %7, %9 : vector<16x512xf32>
    %cst_9 = arith.constant 0.000000e+00 : f32
    %11 = vector.broadcast %cst_9 : f32 to vector<16x512xf32>
    %12 = arith.maximumf %10, %11 : vector<16x512xf32>
    %13 = arith.truncf %12 : vector<16x512xf32> to vector<16x512xbf16>
    %c0_10 = arith.constant 0 : index
    %c0_11 = arith.constant 0 : index
    %14 = vector.load %arg5[%c0_10, %c0_11] : memref<512x896xbf16, #tpu.memory_space<vmem>>, vector<512x896xbf16>
    %cst_12 = arith.constant dense<0.000000e+00> : vector<16x896xf32>
    %15 = tpu.matmul %13, %14, %cst_12 {dimension_numbers = #tpu.dot_dimension_numbers<[1], [0], [0], [1], [0, 0, 1, 1], [], []>} : vector<16x512xbf16>, vector<512x896xbf16>, vector<16x896xf32> -> vector<16x896xf32>
    %c0_13 = arith.constant 0 : index
    %c0_14 = arith.constant 0 : index
    %16 = vector.load %arg6[%c0_13, %c0_14] : memref<1x896xf32, #tpu.memory_space<vmem>>, vector<1x896xf32>
    %17 = vector.broadcast %16 : vector<1x896xf32> to vector<16x896xf32>
    %18 = arith.addf %15, %17 : vector<16x896xf32>
    %19 = math.tanh %18 : vector<16x896xf32>
    %c0_15 = arith.constant 0 : index
    %c0_16 = arith.constant 0 : index
    %20 = vector.load %arg7[%c0_15, %c0_16] : memref<16x896xf32, #tpu.memory_space<vmem>>, vector<16x896xf32>
    tpu.vector_store %arg7[%c0_15, %c0_16], %19 {strides = array<i32>} : memref<16x896xf32, #tpu.memory_space<vmem>>, vector<16x896xf32>,
    return
  }
  func.func @transform_0(%arg0: i32) -> (i32, i32) {
    %c0_i32 = arith.constant 0 : i32
    %c0_i32_0 = arith.constant 0 : i32
    return %arg0, %c0_i32 : i32, i32
  }
  func.func @transform_1(%arg0: i32) -> (i32, i32) {
    %c0_i32 = arith.constant 0 : i32
    %c0_i32_0 = arith.constant 0 : i32
    %c0_i32_1 = arith.constant 0 : i32
    return %c0_i32, %c0_i32_0 : i32, i32
  }
  func.func @transform_2(%arg0: i32) -> (i32, i32) {
    %c0_i32 = arith.constant 0 : i32
    %c0_i32_0 = arith.constant 0 : i32
    %c0_i32_1 = arith.constant 0 : i32
    return %c0_i32, %c0_i32_0 : i32, i32
  }
  func.func @transform_3(%arg0: i32) -> (i32, i32) {
    %c0_i32 = arith.constant 0 : i32
    %c0_i32_0 = arith.constant 0 : i32
    %c0_i32_1 = arith.constant 0 : i32
    return %c0_i32, %c0_i32_0 : i32, i32
  }
  func.func @transform_4(%arg0: i32) -> (i32, i32) {
    %c0_i32 = arith.constant 0 : i32
    %c0_i32_0 = arith.constant 0 : i32
    %c0_i32_1 = arith.constant 0 : i32
    return %c0_i32, %c0_i32_0 : i32, i32
  }
  func.func @transform_5(%arg0: i32) -> (i32, i32) {
    %c0_i32 = arith.constant 0 : i32
    %c0_i32_0 = arith.constant 0 : i32
    %c0_i32_1 = arith.constant 0 : i32
    return %c0_i32, %c0_i32_0 : i32, i32
  }
  func.func @transform_6(%arg0: i32) -> (i32, i32) {
    %c0_i32 = arith.constant 0 : i32
    %c0_i32_0 = arith.constant 0 : i32
    return %arg0, %c0_i32 : i32, i32
  }
}

</mosaic_0001>

<llo_original>
// kernel: generator_forward.1
$region0: #{generator_forward.1}
  #allocation0 [shape = 'u32[]', space=smem, size = 0x4, offset = 0x4, fixed_abs, tag = 'smem constant byte address 0x4 - core index']
  #allocation1 [shape = 'u32[72,128]{1,0:T(1,128)}', space=vmem, size = 0x9000, scoped, tag = 'internal scratch']
  %s0 = inlined_call_operand.vmem [shape: bf16[16,256], index: 0, kind: input, shape index: {}]
  %s1 = inlined_call_operand.hbm [shape: bf16[256,256], index: 1, kind: input, shape index: {}]
  %s2 = inlined_call_operand.hbm [shape: bf16[256,512], index: 2, kind: input, shape index: {}]
  %s3 = inlined_call_operand.vmem [shape: f32[1,512], index: 3, kind: input, shape index: {}]
  %s4 = inlined_call_operand.hbm [shape: bf16[512,896], index: 4, kind: input, shape index: {}]
  %s5 = inlined_call_operand.vmem [shape: f32[1,896], index: 5, kind: input, shape index: {}]
  %s6 = inlined_call_operand.vmem [shape: f32[16,896], index: 6, kind: output, shape index: {}]
  %s7 = sld [smem:[#allocation0]]
  $region46: #{generator_forward.1} parent=0
    _
  %s9 = ssub.s32 1, %s7
  %s10 = scalar_select 0, %s9, %s7
  $region1: #{generator_forward.1} parent=0
    #allocation2 [shape = 'u8[131072]{0}', space=vmem, size = 0x20000, scoped, tag = 'input window, operand 1, single buffered']
    #allocation3 [shape = 's32[1]{0}', space=sflag, size = 0x4, scoped, tag = 'scoped memory for generator_forward.1']
    #allocation4 [shape = 'u8[262144]{0}', space=vmem, size = 0x40000, scoped, tag = 'input window, operand 2, single buffered']
    #allocation5 [shape = 's32[1]{0}', space=sflag, size = 0x4, scoped, tag = 'scoped memory for generator_forward.1']
    #allocation6 [shape = 'u8[917504]{0}', space=vmem, size = 0xe0000, scoped, tag = 'input window, operand 4, single buffered']
    %11 = vsyncpa [#allocation3], 0
    %12 = vsyncpa [#allocation5], 0
    // Predicated region
    $region2: #{generator_forward.1} parent=1 // pred_check
      _
    $region3: #{generator_forward.1} parent=1 // pred_check_branch
      %14 = sbr.rel (0) target = $region5
    $region4: #{generator_forward.1} parent=1 // pred_region
      _
    $region5: #{generator_forward.1} parent=1 // pred_fallthru
      _
    // Predicated region
    $region6: #{generator_forward.1} parent=1 // pred_check
      _
    $region7: #{generator_forward.1} parent=1 // pred_check_branch
      %16 = sbr.rel (0) target = $region9
    $region8: #{generator_forward.1} parent=1 // pred_region
      %18 = vsyncadd [#allocation3], 0
      %s19 = sshll.u32 %s1, 4
      %s20 = int_to_ptr.hbm [resolvable:$true] %s19
      %s21 = sshll.u32 [#allocation2], 4
      %s22 = int_to_ptr.vmem [resolvable:$true] %s21
      %27 = dma.hbm_to_vmem [thread:$0]  %s20, 4096, %s22, [#allocation3], 128, 128, 8
    $region9: #{generator_forward.1} parent=1 // pred_fallthru
      _
    // Predicated region
    $region10: #{generator_forward.1} parent=1 // pred_check
      _
    $region11: #{generator_forward.1} parent=1 // pred_check_branch
      %29 = sbr.rel (0) target = $region13
    $region12: #{generator_forward.1} parent=1 // pred_region
      %31 = vsyncadd [#allocation5], 0
      %s32 = sshll.u32 %s2, 4
      %s33 = int_to_ptr.hbm [resolvable:$true] %s32
      %s34 = sshll.u32 [#allocation4], 4
      %s35 = int_to_ptr.vmem [resolvable:$true] %s34
      %40 = dma.hbm_to_vmem [thread:$0]  %s33, 8192, %s35, [#allocation5], 256, 256, 16
    $region13: #{generator_forward.1} parent=1 // pred_fallthru
      _
    // Predicated region
    $region14: #{generator_forward.1} parent=1 // pred_check
      _
    $region15: #{generator_forward.1} parent=1 // pred_check_branch
      %42 = sbr.rel (0) target = $region17
    $region16: #{generator_forward.1} parent=1 // pred_region
      _
    $region17: #{generator_forward.1} parent=1 // pred_fallthru
      _
    // Predicated region
    $region18: #{generator_forward.1} parent=1 // pred_check
      _
    $region19: #{generator_forward.1} parent=1 // pred_check_branch
      %44 = sbr.rel (0) target = $region21
    $region20: #{generator_forward.1} parent=1 // pred_region
      %46 = vsyncadd [#allocation5], 0
      %s47 = sshll.u32 %s4, 4
      %s48 = int_to_ptr.hbm [resolvable:$true] %s47
      %s49 = sshll.u32 [#allocation6], 4
      %s50 = int_to_ptr.vmem [resolvable:$true] %s49
      %55 = dma.hbm_to_vmem [thread:$0]  %s48, 28672, %s50, [#allocation5], 448, 448, 28
    $region21: #{generator_forward.1} parent=1 // pred_fallthru
      _
    // Predicated region
    $region22: #{generator_forward.1} parent=1 // pred_check
      _
    $region23: #{generator_forward.1} parent=1 // pred_check_branch
      %57 = sbr.rel (0) target = $region25
    $region24: #{generator_forward.1} parent=1 // pred_region
      _
    $region25: #{generator_forward.1} parent=1 // pred_fallthru
      _
    // Predicated region
    $region26: #{generator_forward.1} parent=1 // pred_check
      _
    $region27: #{generator_forward.1} parent=1 // pred_check_branch
      %59 = sbr.rel (0) target = $region29
    $region28: #{generator_forward.1} parent=1 // pred_region
      %61 = dma.done [#allocation3], 4096
    $region29: #{generator_forward.1} parent=1 // pred_fallthru
      _
    // Predicated region
    $region30: #{generator_forward.1} parent=1 // pred_check
      _
    $region31: #{generator_forward.1} parent=1 // pred_check_branch
      %63 = sbr.rel (0) target = $region33
    $region32: #{generator_forward.1} parent=1 // pred_region
      %65 = dma.done [#allocation5], 8192
    $region33: #{generator_forward.1} parent=1 // pred_fallthru
      _
    // Predicated region
    $region34: #{generator_forward.1} parent=1 // pred_check
      _
    $region35: #{generator_forward.1} parent=1 // pred_check_branch
      %67 = sbr.rel (0) target = $region37
    $region36: #{generator_forward.1} parent=1 // pred_region
      %69 = dma.done [#allocation5], 28672
    $region37: #{generator_forward.1} parent=1 // pred_fallthru
      _
    %v70 = vld [vmem:[%s0] sm:$0xff]
    %v71 = vld [vmem:[%s0 + $0x8] sm:$0xff]
    %v72 = vld [vmem:[#allocation2] sm:$0xff]
    %v73 = vld [vmem:[#allocation2 + $0x8] sm:$0xff]
    %v74 = vld [vmem:[#allocation2 + $0x10] sm:$0xff]
    %v75 = vld [vmem:[#allocation2 + $0x18] sm:$0xff]
    %v76 = vld [vmem:[#allocation2 + $0x20] sm:$0xff]
    %v77 = vld [vmem:[#allocation2 + $0x28] sm:$0xff]
    %v78 = vld [vmem:[#allocation2 + $0x30] sm:$0xff]
    %v79 = vld [vmem:[#allocation2 + $0x38] sm:$0xff]
    %v80 = vld [vmem:[#allocation2 + $0x40] sm:$0xff]
    %v81 = vld [vmem:[#allocation2 + $0x48] sm:$0xff]
    %v82 = vld [vmem:[#allocation2 + $0x50] sm:$0xff]
    %v83 = vld [vmem:[#allocation2 + $0x58] sm:$0xff]
    %v84 = vld [vmem:[#allocation2 + $0x60] sm:$0xff]
    %v85 = vld [vmem:[#allocation2 + $0x68] sm:$0xff]
    %v86 = vld [vmem:[#allocation2 + $0x70] sm:$0xff]
    %v87 = vld [vmem:[#allocation2 + $0x78] sm:$0xff]
    %v88 = vld [vmem:[#allocation2 + $0x80] sm:$0xff]
    %v89 = vld [vmem:[#allocation2 + $0x88] sm:$0xff]
    %v90 = vld [vmem:[#allocation2 + $0x90] sm:$0xff]
    %v91 = vld [vmem:[#allocation2 + $0x98] sm:$0xff]
    %v92 = vld [vmem:[#allocation2 + $0xa0] sm:$0xff]
    %v93 = vld [vmem:[#allocation2 + $0xa8] sm:$0xff]
    %v94 = vld [vmem:[#allocation2 + $0xb0] sm:$0xff]
    %v95 = vld [vmem:[#allocation2 + $0xb8] sm:$0xff]
    %v96 = vld [vmem:[#allocation2 + $0xc0] sm:$0xff]
    %v97 = vld [vmem:[#allocation2 + $0xc8] sm:$0xff]
    %v98 = vld [vmem:[#allocation2 + $0xd0] sm:$0xff]
    %v99 = vld [vmem:[#allocation2 + $0xd8] sm:$0xff]
    %v100 = vld [vmem:[#allocation2 + $0xe0] sm:$0xff]
    %v101 = vld [vmem:[#allocation2 + $0xe8] sm:$0xff]
    %v102 = vld [vmem:[#allocation2 + $0xf0] sm:$0xff]
    %v103 = vld [vmem:[#allocation2 + $0xf8] sm:$0xff]
    %v106 = vunpack.c.l.b16 %v70
    %v107 = vunpack.c.h.b16 %v70
    %v108 = vunpack.c.l.b16 %v71
    %v109 = vunpack.c.h.b16 %v71
    %v110 = vpack.c.b16 %v108, %v106
    %v111 = vpack.c.b16 %v109, %v107
    %v146 = vunpack.c.l.b16 %v72
    %v147 = vunpack.c.h.b16 %v72
    %v148 = vunpack.c.l.b16 %v73
    %v149 = vunpack.c.h.b16 %v73
    %v150 = vunpack.c.l.b16 %v74
    %v151 = vunpack.c.h.b16 %v74
    %v152 = vunpack.c.l.b16 %v75
    %v153 = vunpack.c.h.b16 %v75
    %v154 = vunpack.c.l.b16 %v76
    %v155 = vunpack.c.h.b16 %v76
    %v156 = vunpack.c.l.b16 %v77
    %v157 = vunpack.c.h.b16 %v77
    %v158 = vunpack.c.l.b16 %v78
    %v159 = vunpack.c.h.b16 %v78
    %v160 = vunpack.c.l.b16 %v79
    %v161 = vunpack.c.h.b16 %v79
    %v162 = vunpack.c.l.b16 %v80
    %v163 = vunpack.c.h.b16 %v80
    %v164 = vunpack.c.l.b16 %v81
    %v165 = vunpack.c.h.b16 %v81
    %v166 = vunpack.c.l.b16 %v82
    %v167 = vunpack.c.h.b16 %v82
    %v168 = vunpack.c.l.b16 %v83
    %v169 = vunpack.c.h.b16 %v83
    %v170 = vunpack.c.l.b16 %v84
    %v171 = vunpack.c.h.b16 %v84
    %v172 = vunpack.c.l.b16 %v85
    %v173 = vunpack.c.h.b16 %v85
    %v174 = vunpack.c.l.b16 %v86
    %v175 = vunpack.c.h.b16 %v86
    %v176 = vunpack.c.l.b16 %v87
    %v177 = vunpack.c.h.b16 %v87
    %v178 = vunpack.c.l.b16 %v88
    %v179 = vunpack.c.h.b16 %v88
    %v180 = vunpack.c.l.b16 %v89
    %v181 = vunpack.c.h.b16 %v89
    %v182 = vunpack.c.l.b16 %v90
    %v183 = vunpack.c.h.b16 %v90
    %v184 = vunpack.c.l.b16 %v91
    %v185 = vunpack.c.h.b16 %v91
    %v186 = vunpack.c.l.b16 %v92
    %v187 = vunpack.c.h.b16 %v92
    %v188 = vunpack.c.l.b16 %v93
    %v189 = vunpack.c.h.b16 %v93
    %v190 = vunpack.c.l.b16 %v94
    %v191 = vunpack.c.h.b16 %v94
    %v192 = vunpack.c.l.b16 %v95
    %v193 = vunpack.c.h.b16 %v95
    %v194 = vunpack.c.l.b16 %v96
    %v195 = vunpack.c.h.b16 %v96
    %v196 = vunpack.c.l.b16 %v97
    %v197 = vunpack.c.h.b16 %v97
    %v198 = vunpack.c.l.b16 %v98
    %v199 = vunpack.c.h.b16 %v98
    %v200 = vunpack.c.l.b16 %v99
    %v201 = vunpack.c.h.b16 %v99
    %v202 = vunpack.c.l.b16 %v100
    %v203 = vunpack.c.h.b16 %v100
    %v204 = vunpack.c.l.b16 %v101
    %v205 = vunpack.c.h.b16 %v101
    %v206 = vunpack.c.l.b16 %v102
    %v207 = vunpack.c.h.b16 %v102
    %v208 = vunpack.c.l.b16 %v103
    %v209 = vunpack.c.h.b16 %v103
    %v210 = vpack.c.b16 %v148, %v146
    %v211 = vpack.c.b16 %v149, %v147
    %v212 = vpack.c.b16 %v152, %v150
    %v213 = vpack.c.b16 %v153, %v151
    %v214 = vpack.c.b16 %v156, %v154
    %v215 = vpack.c.b16 %v157, %v155
    %v216 = vpack.c.b16 %v160, %v158
    %v217 = vpack.c.b16 %v161, %v159
    %v218 = vpack.c.b16 %v164, %v162
    %v219 = vpack.c.b16 %v165, %v163
    %v220 = vpack.c.b16 %v168, %v166
    %v221 = vpack.c.b16 %v169, %v167
    %v222 = vpack.c.b16 %v172, %v170
    %v223 = vpack.c.b16 %v173, %v171
    %v224 = vpack.c.b16 %v176, %v174
    %v225 = vpack.c.b16 %v177, %v175
    %v226 = vpack.c.b16 %v180, %v178
    %v227 = vpack.c.b16 %v181, %v179
    %v228 = vpack.c.b16 %v184, %v182
    %v229 = vpack.c.b16 %v185, %v183
    %v230 = vpack.c.b16 %v188, %v186
    %v231 = vpack.c.b16 %v189, %v187
    %v232 = vpack.c.b16 %v192, %v190
    %v233 = vpack.c.b16 %v193, %v191
    %v234 = vpack.c.b16 %v196, %v194
    %v235 = vpack.c.b16 %v197, %v195
    %v236 = vpack.c.b16 %v200, %v198
    %v237 = vpack.c.b16 %v201, %v199
    %v238 = vpack.c.b16 %v204, %v202
    %v239 = vpack.c.b16 %v205, %v203
    %v240 = vpack.c.b16 %v208, %v206
    %v241 = vpack.c.b16 %v209, %v207
    %274 = vmatpush.bf16.msra.mxu0 %v224
    %275 = vmatpush.bf16.msra.mxu0 %v222
    %276 = vmatpush.bf16.msra.mxu0 %v220
    %277 = vmatpush.bf16.msra.mxu0 %v218
    %278 = vmatpush.bf16.msra.mxu0 %v216
    %279 = vmatpush.bf16.msra.mxu0 %v214
    %280 = vmatpush.bf16.msra.mxu0 %v212
    %281 = vmatpush.bf16.msra.mxu0 %v210
    %282 = vmatmul.bf16.gmra.mxu0 %v110
    %v283 = vpop.f32.mrf.mxu0
    %v284 = vadd.f32 0.0, %v283
    %v285 = vpop.f32.mrf.mxu0
    %v286 = vadd.f32 0.0, %v285
    %287 = vdwg.mxu0
    %288 = vmatpush.bf16.msra.mxu0 %v240
    %289 = vmatpush.bf16.msra.mxu0 %v238
    %290 = vmatpush.bf16.msra.mxu0 %v236
    %291 = vmatpush.bf16.msra.mxu0 %v234
    %292 = vmatpush.bf16.msra.mxu0 %v232
    %293 = vmatpush.bf16.msra.mxu0 %v230
    %294 = vmatpush.bf16.msra.mxu0 %v228
    %295 = vmatpush.bf16.msra.mxu0 %v226
    %296 = vmatmul.bf16.gmra.mxu0 %v111
    %v297 = vpop.f32.mrf.mxu0
    %v298 = vadd.f32 %v284, %v297
    %v299 = vpop.f32.mrf.mxu0
    %v300 = vadd.f32 %v286, %v299
    %301 = vdwg.mxu0
    %302 = vmatpush.bf16.msra.mxu0 %v225
    %303 = vmatpush.bf16.msra.mxu0 %v223
    %304 = vmatpush.bf16.msra.mxu0 %v221
    %305 = vmatpush.bf16.msra.mxu0 %v219
    %306 = vmatpush.bf16.msra.mxu0 %v217
    %307 = vmatpush.bf16.msra.mxu0 %v215
    %308 = vmatpush.bf16.msra.mxu0 %v213
    %309 = vmatpush.bf16.msra.mxu0 %v211
    %310 = vmatmul.bf16.gmra.mxu0 %v110
    %v311 = vpop.f32.mrf.mxu0
    %v312 = vadd.f32 0.0, %v311
    %v313 = vpop.f32.mrf.mxu0
    %v314 = vadd.f32 0.0, %v313
    %315 = vdwg.mxu0
    %316 = vmatpush.bf16.msra.mxu0 %v241
    %317 = vmatpush.bf16.msra.mxu0 %v239
    %318 = vmatpush.bf16.msra.mxu0 %v237
    %319 = vmatpush.bf16.msra.mxu0 %v235
    %320 = vmatpush.bf16.msra.mxu0 %v233
    %321 = vmatpush.bf16.msra.mxu0 %v231
    %322 = vmatpush.bf16.msra.mxu0 %v229
    %323 = vmatpush.bf16.msra.mxu0 %v227
    %324 = vmatmul.bf16.gmra.mxu0 %v111
    %v325 = vpop.f32.mrf.mxu0
    %v326 = vadd.f32 %v312, %v325
    %v327 = vpop.f32.mrf.mxu0
    %v328 = vadd.f32 %v314, %v327
    %329 = vdwg.mxu0
    %v330 = vmax.f32 %v298, 0.0
    %v331 = vmax.f32 %v326, 0.0
    %v332 = vmax.f32 %v300, 0.0
    %v333 = vmax.f32 %v328, 0.0
    %v334 = vpack.c.bf16 %v332, %v330
    %v335 = vpack.c.bf16 %v333, %v331
    %v336 = vld [vmem:[#allocation4] sm:$0xff]
    %v337 = vld [vmem:[#allocation4 + $0x8] sm:$0xff]
    %v338 = vld [vmem:[#allocation4 + $0x10] sm:$0xff]
    %v339 = vld [vmem:[#allocation4 + $0x18] sm:$0xff]
    %v340 = vld [vmem:[#allocation4 + $0x20] sm:$0xff]
    %v341 = vld [vmem:[#allocation4 + $0x28] sm:$0xff]
    %v342 = vld [vmem:[#allocation4 + $0x30] sm:$0xff]
    %v343 = vld [vmem:[#allocation4 + $0x38] sm:$0xff]
    %v344 = vld [vmem:[#allocation4 + $0x40] sm:$0xff]
    %v345 = vld [vmem:[#allocation4 + $0x48] sm:$0xff]
    %v346 = vld [vmem:[#allocation4 + $0x50] sm:$0xff]
    %v347 = vld [vmem:[#allocation4 + $0x58] sm:$0xff]
    %v348 = vld [vmem:[#allocation4 + $0x60] sm:$0xff]
    %v349 = vld [vmem:[#allocation4 + $0x68] sm:$0xff]
    %v350 = vld [vmem:[#allocation4 + $0x70] sm:$0xff]
    %v351 = vld [vmem:[#allocation4 + $0x78] sm:$0xff]
    %v352 = vld [vmem:[#allocation4 + $0x80] sm:$0xff]
    %v353 = vld [vmem:[#allocation4 + $0x88] sm:$0xff]
    %v354 = vld [vmem:[#allocation4 + $0x90] sm:$0xff]
    %v355 = vld [vmem:[#allocation4 + $0x98] sm:$0xff]
    %v356 = vld [vmem:[#allocation4 + $0xa0] sm:$0xff]
    %v357 = vld [vmem:[#allocation4 + $0xa8] sm:$0xff]
    %v358 = vld [vmem:[#allocation4 + $0xb0] sm:$0xff]
    %v359 = vld [vmem:[#allocation4 + $0xb8] sm:$0xff]
    %v360 = vld [vmem:[#allocation4 + $0xc0] sm:$0xff]
    %v361 = vld [vmem:[#allocation4 + $0xc8] sm:$0xff]
    %v362 = vld [vmem:[#allocation4 + $0xd0] sm:$0xff]
    %v363 = vld [vmem:[#allocation4 + $0xd8] sm:$0xff]
    %v364 = vld [vmem:[#allocation4 + $0xe0] sm:$0xff]
    %v365 = vld [vmem:[#allocation4 + $0xe8] sm:$0xff]
    %v366 = vld [vmem:[#allocation4 + $0xf0] sm:$0xff]
    %v367 = vld [vmem:[#allocation4 + $0xf8] sm:$0xff]
    %v368 = vld [vmem:[#allocation4 + $0x100] sm:$0xff]
    %v369 = vld [vmem:[#allocation4 + $0x108] sm:$0xff]
    %v370 = vld [vmem:[#allocation4 + $0x110] sm:$0xff]
    %v371 = vld [vmem:[#allocation4 + $0x118] sm:$0xff]
    %v372 = vld [vmem:[#allocation4 + $0x120] sm:$0xff]
    %v373 = vld [vmem:[#allocation4 + $0x128] sm:$0xff]
    %v374 = vld [vmem:[#allocation4 + $0x130] sm:$0xff]
    %v375 = vld [vmem:[#allocation4 + $0x138] sm:$0xff]
    %v376 = vld [vmem:[#allocation4 + $0x140] sm:$0xff]
    %v377 = vld [vmem:[#allocation4 + $0x148] sm:$0xff]
    %v378 = vld [vmem:[#allocation4 + $0x150] sm:$0xff]
    %v379 = vld [vmem:[#allocation4 + $0x158] sm:$0xff]
    %v380 = vld [vmem:[#allocation4 + $0x160] sm:$0xff]
    %v381 = vld [vmem:[#allocation4 + $0x168] sm:$0xff]
    %v382 = vld [vmem:[#allocation4 + $0x170] sm:$0xff]
    %v383 = vld [vmem:[#allocation4 + $0x178] sm:$0xff]
    %v384 = vld [vmem:[#allocation4 + $0x180] sm:$0xff]
    %v385 = vld [vmem:[#allocation4 + $0x188] sm:$0xff]
    %v386 = vld [vmem:[#allocation4 + $0x190] sm:$0xff]
    %v387 = vld [vmem:[#allocation4 + $0x198] sm:$0xff]
    %v388 = vld [vmem:[#allocation4 + $0x1a0] sm:$0xff]
    %v389 = vld [vmem:[#allocation4 + $0x1a8] sm:$0xff]
    %v390 = vld [vmem:[#allocation4 + $0x1b0] sm:$0xff]
    %v391 = vld [vmem:[#allocation4 + $0x1b8] sm:$0xff]
    %v392 = vld [vmem:[#allocation4 + $0x1c0] sm:$0xff]
    %v393 = vld [vmem:[#allocation4 + $0x1c8] sm:$0xff]
    %v394 = vld [vmem:[#allocation4 + $0x1d0] sm:$0xff]
    %v395 = vld [vmem:[#allocation4 + $0x1d8] sm:$0xff]
    %v396 = vld [vmem:[#allocation4 + $0x1e0] sm:$0xff]
    %v397 = vld [vmem:[#allocation4 + $0x1e8] sm:$0xff]
    %v398 = vld [vmem:[#allocation4 + $0x1f0] sm:$0xff]
    %v399 = vld [vmem:[#allocation4 + $0x1f8] sm:$0xff]
    %v400 = vld [vmem:[%s3] sm:$0xf]
    %v402 = vperm.slane %v400, 0
    %v403 = vperm.slane %v400, 1
    %v404 = vperm.slane %v400, 2
    %v405 = vperm.slane %v400, 3
    %v474 = vunpack.c.l.b16 %v336
    %v475 = vunpack.c.h.b16 %v336
    %v476 = vunpack.c.l.b16 %v337
    %v477 = vunpack.c.h.b16 %v337
    %v478 = vunpack.c.l.b16 %v338
    %v479 = vunpack.c.h.b16 %v338
    %v480 = vunpack.c.l.b16 %v339
    %v481 = vunpack.c.h.b16 %v339
    %v482 = vunpack.c.l.b16 %v340
    %v483 = vunpack.c.h.b16 %v340
    %v484 = vunpack.c.l.b16 %v341
    %v485 = vunpack.c.h.b16 %v341
    %v486 = vunpack.c.l.b16 %v342
    %v487 = vunpack.c.h.b16 %v342
    %v488 = vunpack.c.l.b16 %v343
    %v489 = vunpack.c.h.b16 %v343
    %v490 = vunpack.c.l.b16 %v344
    %v491 = vunpack.c.h.b16 %v344
    %v492 = vunpack.c.l.b16 %v345
    %v493 = vunpack.c.h.b16 %v345
    %v494 = vunpack.c.l.b16 %v346
    %v495 = vunpack.c.h.b16 %v346
    %v496 = vunpack.c.l.b16 %v347
    %v497 = vunpack.c.h.b16 %v347
    %v498 = vunpack.c.l.b16 %v348
    %v499 = vunpack.c.h.b16 %v348
    %v500 = vunpack.c.l.b16 %v349
    %v501 = vunpack.c.h.b16 %v349
    %v502 = vunpack.c.l.b16 %v350
    %v503 = vunpack.c.h.b16 %v350
    %v504 = vunpack.c.l.b16 %v351
    %v505 = vunpack.c.h.b16 %v351
    %v506 = vunpack.c.l.b16 %v352
    %v507 = vunpack.c.h.b16 %v352
    %v508 = vunpack.c.l.b16 %v353
    %v509 = vunpack.c.h.b16 %v353
    %v510 = vunpack.c.l.b16 %v354
    %v511 = vunpack.c.h.b16 %v354
    %v512 = vunpack.c.l.b16 %v355
    %v513 = vunpack.c.h.b16 %v355
    %v514 = vunpack.c.l.b16 %v356
    %v515 = vunpack.c.h.b16 %v356
    %v516 = vunpack.c.l.b16 %v357
    %v517 = vunpack.c.h.b16 %v357
    %v518 = vunpack.c.l.b16 %v358
    %v519 = vunpack.c.h.b16 %v358
    %v520 = vunpack.c.l.b16 %v359
    %v521 = vunpack.c.h.b16 %v359
    %v522 = vunpack.c.l.b16 %v360
    %v523 = vunpack.c.h.b16 %v360
    %v524 = vunpack.c.l.b16 %v361
    %v525 = vunpack.c.h.b16 %v361
    %v526 = vunpack.c.l.b16 %v362
    %v527 = vunpack.c.h.b16 %v362
    %v528 = vunpack.c.l.b16 %v363
    %v529 = vunpack.c.h.b16 %v363
    %v530 = vunpack.c.l.b16 %v364
    %v531 = vunpack.c.h.b16 %v364
    %v532 = vunpack.c.l.b16 %v365
    %v533 = vunpack.c.h.b16 %v365
    %v534 = vunpack.c.l.b16 %v366
    %v535 = vunpack.c.h.b16 %v366
    %v536 = vunpack.c.l.b16 %v367
    %v537 = vunpack.c.h.b16 %v367
    %v538 = vunpack.c.l.b16 %v368
    %v539 = vunpack.c.h.b16 %v368
    %v540 = vunpack.c.l.b16 %v369
    %v541 = vunpack.c.h.b16 %v369
    %v542 = vunpack.c.l.b16 %v370
    %v543 = vunpack.c.h.b16 %v370
    %v544 = vunpack.c.l.b16 %v371
    %v545 = vunpack.c.h.b16 %v371
    %v546 = vunpack.c.l.b16 %v372
    %v547 = vunpack.c.h.b16 %v372
    %v548 = vunpack.c.l.b16 %v373
    %v549 = vunpack.c.h.b16 %v373
    %v550 = vunpack.c.l.b16 %v374
    %v551 = vunpack.c.h.b16 %v374
    %v552 = vunpack.c.l.b16 %v375
    %v553 = vunpack.c.h.b16 %v375
    %v554 = vunpack.c.l.b16 %v376
    %v555 = vunpack.c.h.b16 %v376
    %v556 = vunpack.c.l.b16 %v377
    %v557 = vunpack.c.h.b16 %v377
    %v558 = vunpack.c.l.b16 %v378
    %v559 = vunpack.c.h.b16 %v378
    %v560 = vunpack.c.l.b16 %v379
    %v561 = vunpack.c.h.b16 %v379
    %v562 = vunpack.c.l.b16 %v380
    %v563 = vunpack.c.h.b16 %v380
    %v564 = vunpack.c.l.b16 %v381
    %v565 = vunpack.c.h.b16 %v381
    %v566 = vunpack.c.l.b16 %v382
    %v567 = vunpack.c.h.b16 %v382
    %v568 = vunpack.c.l.b16 %v383
    %v569 = vunpack.c.h.b16 %v383
    %v570 = vunpack.c.l.b16 %v384
    %v571 = vunpack.c.h.b16 %v384
    %v572 = vunpack.c.l.b16 %v385
    %v573 = vunpack.c.h.b16 %v385
    %v574 = vunpack.c.l.b16 %v386
    %v575 = vunpack.c.h.b16 %v386
    %v576 = vunpack.c.l.b16 %v387
    %v577 = vunpack.c.h.b16 %v387
    %v578 = vunpack.c.l.b16 %v388
    %v579 = vunpack.c.h.b16 %v388
    %v580 = vunpack.c.l.b16 %v389
    %v581 = vunpack.c.h.b16 %v389
    %v582 = vunpack.c.l.b16 %v390
    %v583 = vunpack.c.h.b16 %v390
    %v584 = vunpack.c.l.b16 %v391
    %v585 = vunpack.c.h.b16 %v391
    %v586 = vunpack.c.l.b16 %v392
    %v587 = vunpack.c.h.b16 %v392
    %v588 = vunpack.c.l.b16 %v393
    %v589 = vunpack.c.h.b16 %v393
    %v590 = vunpack.c.l.b16 %v394
    %v591 = vunpack.c.h.b16 %v394
    %v592 = vunpack.c.l.b16 %v395
    %v593 = vunpack.c.h.b16 %v395
    %v594 = vunpack.c.l.b16 %v396
    %v595 = vunpack.c.h.b16 %v396
    %v596 = vunpack.c.l.b16 %v397
    %v597 = vunpack.c.h.b16 %v397
    %v598 = vunpack.c.l.b16 %v398
    %v599 = vunpack.c.h.b16 %v398
    %v600 = vunpack.c.l.b16 %v399
    %v601 = vunpack.c.h.b16 %v399
    %v602 = vpack.c.b16 %v478, %v474
    %v603 = vpack.c.b16 %v479, %v475
    %v604 = vpack.c.b16 %v480, %v476
    %v605 = vpack.c.b16 %v481, %v477
    %v606 = vpack.c.b16 %v486, %v482
    %v607 = vpack.c.b16 %v487, %v483
    %v608 = vpack.c.b16 %v488, %v484
    %v609 = vpack.c.b16 %v489, %v485
    %v610 = vpack.c.b16 %v494, %v490
    %v611 = vpack.c.b16 %v495, %v491
    %v612 = vpack.c.b16 %v496, %v492
    %v613 = vpack.c.b16 %v497, %v493
    %v614 = vpack.c.b16 %v502, %v498
    %v615 = vpack.c.b16 %v503, %v499
    %v616 = vpack.c.b16 %v504, %v500
    %v617 = vpack.c.b16 %v505, %v501
    %v618 = vpack.c.b16 %v510, %v506
    %v619 = vpack.c.b16 %v511, %v507
    %v620 = vpack.c.b16 %v512, %v508
    %v621 = vpack.c.b16 %v513, %v509
    %v622 = vpack.c.b16 %v518, %v514
    %v623 = vpack.c.b16 %v519, %v515
    %v624 = vpack.c.b16 %v520, %v516
    %v625 = vpack.c.b16 %v521, %v517
    %v626 = vpack.c.b16 %v526, %v522
    %v627 = vpack.c.b16 %v527, %v523
    %v628 = vpack.c.b16 %v528, %v524
    %v629 = vpack.c.b16 %v529, %v525
    %v630 = vpack.c.b16 %v534, %v530
    %v631 = vpack.c.b16 %v535, %v531
    %v632 = vpack.c.b16 %v536, %v532
    %v633 = vpack.c.b16 %v537, %v533
    %v634 = vpack.c.b16 %v542, %v538
    %v635 = vpack.c.b16 %v543, %v539
    %v636 = vpack.c.b16 %v544, %v540
    %v637 = vpack.c.b16 %v545, %v541
    %v638 = vpack.c.b16 %v550, %v546
    %v639 = vpack.c.b16 %v551, %v547
    %v640 = vpack.c.b16 %v552, %v548
    %v641 = vpack.c.b16 %v553, %v549
    %v642 = vpack.c.b16 %v558, %v554
    %v643 = vpack.c.b16 %v559, %v555
    %v644 = vpack.c.b16 %v560, %v556
    %v645 = vpack.c.b16 %v561, %v557
    %v646 = vpack.c.b16 %v566, %v562
    %v647 = vpack.c.b16 %v567, %v563
    %v648 = vpack.c.b16 %v568, %v564
    %v649 = vpack.c.b16 %v569, %v565
    %v650 = vpack.c.b16 %v574, %v570
    %v651 = vpack.c.b16 %v575, %v571
    %v652 = vpack.c.b16 %v576, %v572
    %v653 = vpack.c.b16 %v577, %v573
    %v654 = vpack.c.b16 %v582, %v578
    %v655 = vpack.c.b16 %v583, %v579
    %v656 = vpack.c.b16 %v584, %v580
    %v657 = vpack.c.b16 %v585, %v581
    %v658 = vpack.c.b16 %v590, %v586
    %v659 = vpack.c.b16 %v591, %v587
    %v660 = vpack.c.b16 %v592, %v588
    %v661 = vpack.c.b16 %v593, %v589
    %v662 = vpack.c.b16 %v598, %v594
    %v663 = vpack.c.b16 %v599, %v595
    %v664 = vpack.c.b16 %v600, %v596
    %v665 = vpack.c.b16 %v601, %v597
    %730 = vmatpush.bf16.msra.mxu0 %v630
    %731 = vmatpush.bf16.msra.mxu0 %v626
    %732 = vmatpush.bf16.msra.mxu0 %v622
    %733 = vmatpush.bf16.msra.mxu0 %v618
    %734 = vmatpush.bf16.msra.mxu0 %v614
    %735 = vmatpush.bf16.msra.mxu0 %v610
    %736 = vmatpush.bf16.msra.mxu0 %v606
    %737 = vmatpush.bf16.msra.mxu0 %v602
    %738 = vmatmul.bf16.gmra.mxu0 %v334
    %v739 = vpop.f32.mrf.mxu0
    %v740 = vadd.f32 %v402, %v739
    %v741 = vpop.f32.mrf.mxu0
    %v742 = vadd.f32 %v402, %v741
    %743 = vdwg.mxu0
    %744 = vmatpush.bf16.msra.mxu0 %v662
    %745 = vmatpush.bf16.msra.mxu0 %v658
    %746 = vmatpush.bf16.msra.mxu0 %v654
    %747 = vmatpush.bf16.msra.mxu0 %v650
    %748 = vmatpush.bf16.msra.mxu0 %v646
    %749 = vmatpush.bf16.msra.mxu0 %v642
    %750 = vmatpush.bf16.msra.mxu0 %v638
    %751 = vmatpush.bf16.msra.mxu0 %v634
    %752 = vmatmul.bf16.gmra.mxu0 %v335
    %v753 = vpop.f32.mrf.mxu0
    %v754 = vadd.f32 %v740, %v753
    %v755 = vpop.f32.mrf.mxu0
    %v756 = vadd.f32 %v742, %v755
    %757 = vdwg.mxu0
    %758 = vmatpush.bf16.msra.mxu0 %v631
    %759 = vmatpush.bf16.msra.mxu0 %v627
    %760 = vmatpush.bf16.msra.mxu0 %v623
    %761 = vmatpush.bf16.msra.mxu0 %v619
    %762 = vmatpush.bf16.msra.mxu0 %v615
    %763 = vmatpush.bf16.msra.mxu0 %v611
    %764 = vmatpush.bf16.msra.mxu0 %v607
    %765 = vmatpush.bf16.msra.mxu0 %v603
    %766 = vmatmul.bf16.gmra.mxu0 %v334
    %v767 = vpop.f32.mrf.mxu0
    %v768 = vadd.f32 %v403, %v767
    %v769 = vpop.f32.mrf.mxu0
    %v770 = vadd.f32 %v403, %v769
    %771 = vdwg.mxu0
    %772 = vmatpush.bf16.msra.mxu0 %v663
    %773 = vmatpush.bf16.msra.mxu0 %v659
    %774 = vmatpush.bf16.msra.mxu0 %v655
    %775 = vmatpush.bf16.msra.mxu0 %v651
    %776 = vmatpush.bf16.msra.mxu0 %v647
    %777 = vmatpush.bf16.msra.mxu0 %v643
    %778 = vmatpush.bf16.msra.mxu0 %v639
    %779 = vmatpush.bf16.msra.mxu0 %v635
    %780 = vmatmul.bf16.gmra.mxu0 %v335
    %v781 = vpop.f32.mrf.mxu0
    %v782 = vadd.f32 %v768, %v781
    %v783 = vpop.f32.mrf.mxu0
    %v784 = vadd.f32 %v770, %v783
    %785 = vdwg.mxu0
    %786 = vmatpush.bf16.msra.mxu0 %v632
    %787 = vmatpush.bf16.msra.mxu0 %v628
    %788 = vmatpush.bf16.msra.mxu0 %v624
    %789 = vmatpush.bf16.msra.mxu0 %v620
    %790 = vmatpush.bf16.msra.mxu0 %v616
    %791 = vmatpush.bf16.msra.mxu0 %v612
    %792 = vmatpush.bf16.msra.mxu0 %v608
    %793 = vmatpush.bf16.msra.mxu0 %v604
    %794 = vmatmul.bf16.gmra.mxu0 %v334
    %v795 = vpop.f32.mrf.mxu0
    %v796 = vadd.f32 %v404, %v795
    %v797 = vpop.f32.mrf.mxu0
    %v798 = vadd.f32 %v404, %v797
    %799 = vdwg.mxu0
    %800 = vmatpush.bf16.msra.mxu0 %v664
    %801 = vmatpush.bf16.msra.mxu0 %v660
    %802 = vmatpush.bf16.msra.mxu0 %v656
    %803 = vmatpush.bf16.msra.mxu0 %v652
    %804 = vmatpush.bf16.msra.mxu0 %v648
    %805 = vmatpush.bf16.msra.mxu0 %v644
    %806 = vmatpush.bf16.msra.mxu0 %v640
    %807 = vmatpush.bf16.msra.mxu0 %v636
    %808 = vmatmul.bf16.gmra.mxu0 %v335
    %v809 = vpop.f32.mrf.mxu0
    %v810 = vadd.f32 %v796, %v809
    %v811 = vpop.f32.mrf.mxu0
    %v812 = vadd.f32 %v798, %v811
    %813 = vdwg.mxu0
    %814 = vmatpush.bf16.msra.mxu0 %v633
    %815 = vmatpush.bf16.msra.mxu0 %v629
    %816 = vmatpush.bf16.msra.mxu0 %v625
    %817 = vmatpush.bf16.msra.mxu0 %v621
    %818 = vmatpush.bf16.msra.mxu0 %v617
    %819 = vmatpush.bf16.msra.mxu0 %v613
    %820 = vmatpush.bf16.msra.mxu0 %v609
    %821 = vmatpush.bf16.msra.mxu0 %v605
    %822 = vmatmul.bf16.gmra.mxu0 %v334
    %v823 = vpop.f32.mrf.mxu0
    %v824 = vadd.f32 %v405, %v823
    %v825 = vpop.f32.mrf.mxu0
    %v826 = vadd.f32 %v405, %v825
    %827 = vdwg.mxu0
    %828 = vmatpush.bf16.msra.mxu0 %v665
    %829 = vmatpush.bf16.msra.mxu0 %v661
    %830 = vmatpush.bf16.msra.mxu0 %v657
    %831 = vmatpush.bf16.msra.mxu0 %v653
    %832 = vmatpush.bf16.msra.mxu0 %v649
    %833 = vmatpush.bf16.msra.mxu0 %v645
    %834 = vmatpush.bf16.msra.mxu0 %v641
    %835 = vmatpush.bf16.msra.mxu0 %v637
    %836 = vmatmul.bf16.gmra.mxu0 %v335
    %v837 = vpop.f32.mrf.mxu0
    %v838 = vadd.f32 %v824, %v837
    %v839 = vpop.f32.mrf.mxu0
    %v840 = vadd.f32 %v826, %v839
    %841 = vdwg.mxu0
    %v842 = vmax.f32 %v754, 0.0
    %v843 = vmax.f32 %v782, 0.0
    %v844 = vmax.f32 %v810, 0.0
    %v845 = vmax.f32 %v838, 0.0
    %v846 = vmax.f32 %v756, 0.0
    %v847 = vmax.f32 %v784, 0.0
    %v848 = vmax.f32 %v812, 0.0
    %v849 = vmax.f32 %v840, 0.0
    %v850 = vpack.c.bf16 %v846, %v842
    %v851 = vpack.c.bf16 %v847, %v843
    %v852 = vpack.c.bf16 %v848, %v844
    %v853 = vpack.c.bf16 %v849, %v845
    %v854 = vld [vmem:[#allocation6] sm:$0xff]
    %v855 = vld [vmem:[#allocation6 + $0x8] sm:$0xff]
    %v856 = vld [vmem:[#allocation6 + $0x10] sm:$0xff]
    %v857 = vld [vmem:[#allocation6 + $0x18] sm:$0xf]
    %v858 = vld [vmem:[#allocation6 + $0x1c] sm:$0xff]
    %v859 = vld [vmem:[#allocation6 + $0x24] sm:$0xff]
    %v860 = vld [vmem:[#allocation6 + $0x2c] sm:$0xff]
    %v861 = vld [vmem:[#allocation6 + $0x34] sm:$0xf]
    %v862 = vld [vmem:[#allocation6 + $0x38] sm:$0xff]
    %v863 = vld [vmem:[#allocation6 + $0x40] sm:$0xff]
    %v864 = vld [vmem:[#allocation6 + $0x48] sm:$0xff]
    %v865 = vld [vmem:[#allocation6 + $0x50] sm:$0xf]
    %v866 = vld [vmem:[#allocation6 + $0x54] sm:$0xff]
    %v867 = vld [vmem:[#allocation6 + $0x5c] sm:$0xff]
    %v868 = vld [vmem:[#allocation6 + $0x64] sm:$0xff]
    %v869 = vld [vmem:[#allocation6 + $0x6c] sm:$0xf]
    %v870 = vld [vmem:[#allocation6 + $0x70] sm:$0xff]
    %v871 = vld [vmem:[#allocation6 + $0x78] sm:$0xff]
    %v872 = vld [vmem:[#allocation6 + $0x80] sm:$0xff]
    %v873 = vld [vmem:[#allocation6 + $0x88] sm:$0xf]
    %v874 = vld [vmem:[#allocation6 + $0x8c] sm:$0xff]
    %v875 = vld [vmem:[#allocation6 + $0x94] sm:$0xff]
    %v876 = vld [vmem:[#allocation6 + $0x9c] sm:$0xff]
    %v877 = vld [vmem:[#allocation6 + $0xa4] sm:$0xf]
    %v878 = vld [vmem:[#allocation6 + $0xa8] sm:$0xff]
    %v879 = vld [vmem:[#allocation6 + $0xb0] sm:$0xff]
    %v880 = vld [vmem:[#allocation6 + $0xb8] sm:$0xff]
    %v881 = vld [vmem:[#allocation6 + $0xc0] sm:$0xf]
    %v882 = vld [vmem:[#allocation6 + $0xc4] sm:$0xff]
    %v883 = vld [vmem:[#allocation6 + $0xcc] sm:$0xff]
    %v884 = vld [vmem:[#allocation6 + $0xd4] sm:$0xff]
    %v885 = vld [vmem:[#allocation6 + $0xdc] sm:$0xf]
    %v886 = vld [vmem:[#allocation6 + $0xe0] sm:$0xff]
    %v887 = vld [vmem:[#allocation6 + $0xe8] sm:$0xff]
    %v888 = vld [vmem:[#allocation6 + $0xf0] sm:$0xff]
    %v889 = vld [vmem:[#allocation6 + $0xf8] sm:$0xf]
    %v890 = vld [vmem:[#allocation6 + $0xfc] sm:$0xff]
    %v891 = vld [vmem:[#allocation6 + $0x104] sm:$0xff]
    %v892 = vld [vmem:[#allocation6 + $0x10c] sm:$0xff]
    %v893 = vld [vmem:[#allocation6 + $0x114] sm:$0xf]
    %v894 = vld [vmem:[#allocation6 + $0x118] sm:$0xff]
    %v895 = vld [vmem:[#allocation6 + $0x120] sm:$0xff]
    %v896 = vld [vmem:[#allocation6 + $0x128] sm:$0xff]
    %v897 = vld [vmem:[#allocation6 + $0x130] sm:$0xf]
    %v898 = vld [vmem:[#allocation6 + $0x134] sm:$0xff]
    %v899 = vld [vmem:[#allocation6 + $0x13c] sm:$0xff]
    %v900 = vld [vmem:[#allocation6 + $0x144] sm:$0xff]
    %v901 = vld [vmem:[#allocation6 + $0x14c] sm:$0xf]
    %v902 = vld [vmem:[#allocation6 + $0x150] sm:$0xff]
    %v903 = vld [vmem:[#allocation6 + $0x158] sm:$0xff]
    %v904 = vld [vmem:[#allocation6 + $0x160] sm:$0xff]
    %v905 = vld [vmem:[#allocation6 + $0x168] sm:$0xf]
    %v906 = vld [vmem:[#allocation6 + $0x16c] sm:$0xff]
    %v907 = vld [vmem:[#allocation6 + $0x174] sm:$0xff]
    %v908 = vld [vmem:[#allocation6 + $0x17c] sm:$0xff]
    %v909 = vld [vmem:[#allocation6 + $0x184] sm:$0xf]
    %v910 = vld [vmem:[#allocation6 + $0x188] sm:$0xff]
    %v911 = vld [vmem:[#allocation6 + $0x190] sm:$0xff]
    %v912 = vld [vmem:[#allocation6 + $0x198] sm:$0xff]
    %v913 = vld [vmem:[#allocation6 + $0x1a0] sm:$0xf]
    %v914 = vld [vmem:[#allocation6 + $0x1a4] sm:$0xff]
    %v915 = vld [vmem:[#allocation6 + $0x1ac] sm:$0xff]
    %v916 = vld [vmem:[#allocation6 + $0x1b4] sm:$0xff]
    %v917 = vld [vmem:[#allocation6 + $0x1bc] sm:$0xf]
    %v918 = vld [vmem:[#allocation6 + $0x1c0] sm:$0xff]
    %v919 = vld [vmem:[#allocation6 + $0x1c8] sm:$0xff]
    %v920 = vld [vmem:[#allocation6 + $0x1d0] sm:$0xff]
    %v921 = vld [vmem:[#allocation6 + $0x1d8] sm:$0xf]
    %v922 = vld [vmem:[#allocation6 + $0x1dc] sm:$0xff]
    %v923 = vld [vmem:[#allocation6 + $0x1e4] sm:$0xff]
    %v924 = vld [vmem:[#allocation6 + $0x1ec] sm:$0xff]
    %v925 = vld [vmem:[#allocation6 + $0x1f4] sm:$0xf]
    %v926 = vld [vmem:[#allocation6 + $0x1f8] sm:$0xff]
    %v927 = vld [vmem:[#allocation6 + $0x200] sm:$0xff]
    %v928 = vld [vmem:[#allocation6 + $0x208] sm:$0xff]
    %v929 = vld [vmem:[#allocation6 + $0x210] sm:$0xf]
    %v930 = vld [vmem:[#allocation6 + $0x214] sm:$0xff]
    %v931 = vld [vmem:[#allocation6 + $0x21c] sm:$0xff]
    %v932 = vld [vmem:[#allocation6 + $0x224] sm:$0xff]
    %v933 = vld [vmem:[#allocation6 + $0x22c] sm:$0xf]
    %v934 = vld [vmem:[#allocation6 + $0x230] sm:$0xff]
    %v935 = vld [vmem:[#allocation6 + $0x238] sm:$0xff]
    %v936 = vld [vmem:[#allocation6 + $0x240] sm:$0xff]
    %v937 = vld [vmem:[#allocation6 + $0x248] sm:$0xf]
    %v938 = vld [vmem:[#allocation6 + $0x24c] sm:$0xff]
    %v939 = vld [vmem:[#allocation6 + $0x254] sm:$0xff]
    %v940 = vld [vmem:[#allocation6 + $0x25c] sm:$0xff]
    %v941 = vld [vmem:[#allocation6 + $0x264] sm:$0xf]
    %v942 = vld [vmem:[#allocation6 + $0x268] sm:$0xff]
    %v943 = vld [vmem:[#allocation6 + $0x270] sm:$0xff]
    %v944 = vld [vmem:[#allocation6 + $0x278] sm:$0xff]
    %v945 = vld [vmem:[#allocation6 + $0x280] sm:$0xf]
    %v946 = vld [vmem:[#allocation6 + $0x284] sm:$0xff]
    %v947 = vld [vmem:[#allocation6 + $0x28c] sm:$0xff]
    %v948 = vld [vmem:[#allocation6 + $0x294] sm:$0xff]
    %v949 = vld [vmem:[#allocation6 + $0x29c] sm:$0xf]
    %v950 = vld [vmem:[#allocation6 + $0x2a0] sm:$0xff]
    %v951 = vld [vmem:[#allocation6 + $0x2a8] sm:$0xff]
    %v952 = vld [vmem:[#allocation6 + $0x2b0] sm:$0xff]
    %v953 = vld [vmem:[#allocation6 + $0x2b8] sm:$0xf]
    %v954 = vld [vmem:[#allocation6 + $0x2bc] sm:$0xff]
    %v955 = vld [vmem:[#allocation6 + $0x2c4] sm:$0xff]
    %v956 = vld [vmem:[#allocation6 + $0x2cc] sm:$0xff]
    %v957 = vld [vmem:[#allocation6 + $0x2d4] sm:$0xf]
    %v958 = vld [vmem:[#allocation6 + $0x2d8] sm:$0xff]
    %v959 = vld [vmem:[#allocation6 + $0x2e0] sm:$0xff]
    %v960 = vld [vmem:[#allocation6 + $0x2e8] sm:$0xff]
    %v961 = vld [vmem:[#allocation6 + $0x2f0] sm:$0xf]
    %v962 = vld [vmem:[#allocation6 + $0x2f4] sm:$0xff]
    %v963 = vld [vmem:[#allocation6 + $0x2fc] sm:$0xff]
    %v964 = vld [vmem:[#allocation6 + $0x304] sm:$0xff]
    %v965 = vld [vmem:[#allocation6 + $0x30c] sm:$0xf]
    %v966 = vld [vmem:[#allocation6 + $0x310] sm:$0xff]
    %v967 = vld [vmem:[#allocation6 + $0x318] sm:$0xff]
    %v968 = vld [vmem:[#allocation6 + $0x320] sm:$0xff]
    %v969 = vld [vmem:[#allocation6 + $0x328] sm:$0xf]
    %v970 = vld [vmem:[#allocation6 + $0x32c] sm:$0xff]
    %v971 = vld [vmem:[#allocation6 + $0x334] sm:$0xff]
    %v972 = vld [vmem:[#allocation6 + $0x33c] sm:$0xff]
    %v973 = vld [vmem:[#allocation6 + $0x344] sm:$0xf]
    %v974 = vld [vmem:[#allocation6 + $0x348] sm:$0xff]
    %v975 = vld [vmem:[#allocation6 + $0x350] sm:$0xff]
    %v976 = vld [vmem:[#allocation6 + $0x358] sm:$0xff]
    %v977 = vld [vmem:[#allocation6 + $0x360] sm:$0xf]
    %v978 = vld [vmem:[#allocation6 + $0x364] sm:$0xff]
    %v979 = vld [vmem:[#allocation6 + $0x36c] sm:$0xff]
    %v980 = vld [vmem:[#allocation6 + $0x374] sm:$0xff]
    %v981 = vld [vmem:[#allocation6 + $0x37c] sm:$0xf]
    %v982 = vld [vmem:[#allocation6 + $0x380] sm:$0xff]
    %v983 = vld [vmem:[#allocation6 + $0x388] sm:$0xff]
    %v984 = vld [vmem:[#allocation6 + $0x390] sm:$0xff]
    %v985 = vld [vmem:[#allocation6 + $0x398] sm:$0xf]
    %v986 = vld [vmem:[#allocation6 + $0x39c] sm:$0xff]
    %v987 = vld [vmem:[#allocation6 + $0x3a4] sm:$0xff]
    %v988 = vld [vmem:[#allocation6 + $0x3ac] sm:$0xff]
    %v989 = vld [vmem:[#allocation6 + $0x3b4] sm:$0xf]
    %v990 = vld [vmem:[#allocation6 + $0x3b8] sm:$0xff]
    %v991 = vld [vmem:[#allocation6 + $0x3c0] sm:$0xff]
    %v992 = vld [vmem:[#allocation6 + $0x3c8] sm:$0xff]
    %v993 = vld [vmem:[#allocation6 + $0x3d0] sm:$0xf]
    %v994 = vld [vmem:[#allocation6 + $0x3d4] sm:$0xff]
    %v995 = vld [vmem:[#allocation6 + $0x3dc] sm:$0xff]
    %v996 = vld [vmem:[#allocation6 + $0x3e4] sm:$0xff]
    %v997 = vld [vmem:[#allocation6 + $0x3ec] sm:$0xf]
    %v998 = vld [vmem:[#allocation6 + $0x3f0] sm:$0xff]
    %v999 = vld [vmem:[#allocation6 + $0x3f8] sm:$0xff]
    %v1000 = vld [vmem:[#allocation6 + $0x400] sm:$0xff]
    %v1001 = vld [vmem:[#allocation6 + $0x408] sm:$0xf]
    %v1002 = vld [vmem:[#allocation6 + $0x40c] sm:$0xff]
    %v1003 = vld [vmem:[#allocation6 + $0x414] sm:$0xff]
    %v1004 = vld [vmem:[#allocation6 + $0x41c] sm:$0xff]
    %v1005 = vld [vmem:[#allocation6 + $0x424] sm:$0xf]
    %v1006 = vld [vmem:[#allocation6 + $0x428] sm:$0xff]
    %v1007 = vld [vmem:[#allocation6 + $0x430] sm:$0xff]
    %v1008 = vld [vmem:[#allocation6 + $0x438] sm:$0xff]
    %v1009 = vld [vmem:[#allocation6 + $0x440] sm:$0xf]
    %v1010 = vld [vmem:[#allocation6 + $0x444] sm:$0xff]
    %v1011 = vld [vmem:[#allocation6 + $0x44c] sm:$0xff]
    %v1012 = vld [vmem:[#allocation6 + $0x454] sm:$0xff]
    %v1013 = vld [vmem:[#allocation6 + $0x45c] sm:$0xf]
    %v1014 = vld [vmem:[#allocation6 + $0x460] sm:$0xff]
    %v1015 = vld [vmem:[#allocation6 + $0x468] sm:$0xff]
    %v1016 = vld [vmem:[#allocation6 + $0x470] sm:$0xff]
    %v1017 = vld [vmem:[#allocation6 + $0x478] sm:$0xf]
    %v1018 = vld [vmem:[#allocation6 + $0x47c] sm:$0xff]
    %v1019 = vld [vmem:[#allocation6 + $0x484] sm:$0xff]
    %v1020 = vld [vmem:[#allocation6 + $0x48c] sm:$0xff]
    %v1021 = vld [vmem:[#allocation6 + $0x494] sm:$0xf]
    %v1022 = vld [vmem:[#allocation6 + $0x498] sm:$0xff]
    %v1023 = vld [vmem:[#allocation6 + $0x4a0] sm:$0xff]
    %v1024 = vld [vmem:[#allocation6 + $0x4a8] sm:$0xff]
    %v1025 = vld [vmem:[#allocation6 + $0x4b0] sm:$0xf]
    %v1026 = vld [vmem:[#allocation6 + $0x4b4] sm:$0xff]
    %v1027 = vld [vmem:[#allocation6 + $0x4bc] sm:$0xff]
    %v1028 = vld [vmem:[#allocation6 + $0x4c4] sm:$0xff]
    %v1029 = vld [vmem:[#allocation6 + $0x4cc] sm:$0xf]
    %v1030 = vld [vmem:[#allocation6 + $0x4d0] sm:$0xff]
    %v1031 = vld [vmem:[#allocation6 + $0x4d8] sm:$0xff]
    %v1032 = vld [vmem:[#allocation6 + $0x4e0] sm:$0xff]
    %v1033 = vld [vmem:[#allocation6 + $0x4e8] sm:$0xf]
    %v1034 = vld [vmem:[#allocation6 + $0x4ec] sm:$0xff]
    %v1035 = vld [vmem:[#allocation6 + $0x4f4] sm:$0xff]
    %v1036 = vld [vmem:[#allocation6 + $0x4fc] sm:$0xff]
    %v1037 = vld [vmem:[#allocation6 + $0x504] sm:$0xf]
    %v1038 = vld [vmem:[#allocation6 + $0x508] sm:$0xff]
    %v1039 = vld [vmem:[#allocation6 + $0x510] sm:$0xff]
    %v1040 = vld [vmem:[#allocation6 + $0x518] sm:$0xff]
    %v1041 = vld [vmem:[#allocation6 + $0x520] sm:$0xf]
    %v1042 = vld [vmem:[#allocation6 + $0x524] sm:$0xff]
    %v1043 = vld [vmem:[#allocation6 + $0x52c] sm:$0xff]
    %v1044 = vld [vmem:[#allocation6 + $0x534] sm:$0xff]
    %v1045 = vld [vmem:[#allocation6 + $0x53c] sm:$0xf]
    %v1046 = vld [vmem:[#allocation6 + $0x540] sm:$0xff]
    %v1047 = vld [vmem:[#allocation6 + $0x548] sm:$0xff]
    %v1048 = vld [vmem:[#allocation6 + $0x550] sm:$0xff]
    %v1049 = vld [vmem:[#allocation6 + $0x558] sm:$0xf]
    %v1050 = vld [vmem:[#allocation6 + $0x55c] sm:$0xff]
    %v1051 = vld [vmem:[#allocation6 + $0x564] sm:$0xff]
    %v1052 = vld [vmem:[#allocation6 + $0x56c] sm:$0xff]
    %v1053 = vld [vmem:[#allocation6 + $0x574] sm:$0xf]
    %v1054 = vld [vmem:[#allocation6 + $0x578] sm:$0xff]
    %v1055 = vld [vmem:[#allocation6 + $0x580] sm:$0xff]
    %v1056 = vld [vmem:[#allocation6 + $0x588] sm:$0xff]
    %v1057 = vld [vmem:[#allocation6 + $0x590] sm:$0xf]
    %v1058 = vld [vmem:[#allocation6 + $0x594] sm:$0xff]
    %v1059 = vld [vmem:[#allocation6 + $0x59c] sm:$0xff]
    %v1060 = vld [vmem:[#allocation6 + $0x5a4] sm:$0xff]
    %v1061 = vld [vmem:[#allocation6 + $0x5ac] sm:$0xf]
    %v1062 = vld [vmem:[#allocation6 + $0x5b0] sm:$0xff]
    %v1063 = vld [vmem:[#allocation6 + $0x5b8] sm:$0xff]
    %v1064 = vld [vmem:[#allocation6 + $0x5c0] sm:$0xff]
    %v1065 = vld [vmem:[#allocation6 + $0x5c8] sm:$0xf]
    %v1066 = vld [vmem:[#allocation6 + $0x5cc] sm:$0xff]
    %v1067 = vld [vmem:[#allocation6 + $0x5d4] sm:$0xff]
    %v1068 = vld [vmem:[#allocation6 + $0x5dc] sm:$0xff]
    %v1069 = vld [vmem:[#allocation6 + $0x5e4] sm:$0xf]
    %v1070 = vld [vmem:[#allocation6 + $0x5e8] sm:$0xff]
    %v1071 = vld [vmem:[#allocation6 + $0x5f0] sm:$0xff]
    %v1072 = vld [vmem:[#allocation6 + $0x5f8] sm:$0xff]
    %v1073 = vld [vmem:[#allocation6 + $0x600] sm:$0xf]
    %v1074 = vld [vmem:[#allocation6 + $0x604] sm:$0xff]
    %v1075 = vld [vmem:[#allocation6 + $0x60c] sm:$0xff]
    %v1076 = vld [vmem:[#allocation6 + $0x614] sm:$0xff]
    %v1077 = vld [vmem:[#allocation6 + $0x61c] sm:$0xf]
    %v1078 = vld [vmem:[#allocation6 + $0x620] sm:$0xff]
    %v1079 = vld [vmem:[#allocation6 + $0x628] sm:$0xff]
    %v1080 = vld [vmem:[#allocation6 + $0x630] sm:$0xff]
    %v1081 = vld [vmem:[#allocation6 + $0x638] sm:$0xf]
    %v1082 = vld [vmem:[#allocation6 + $0x63c] sm:$0xff]
    %v1083 = vld [vmem:[#allocation6 + $0x644] sm:$0xff]
    %v1084 = vld [vmem:[#allocation6 + $0x64c] sm:$0xff]
    %v1085 = vld [vmem:[#allocation6 + $0x654] sm:$0xf]
    %v1086 = vld [vmem:[#allocation6 + $0x658] sm:$0xff]
    %v1087 = vld [vmem:[#allocation6 + $0x660] sm:$0xff]
    %v1088 = vld [vmem:[#allocation6 + $0x668] sm:$0xff]
    %v1089 = vld [vmem:[#allocation6 + $0x670] sm:$0xf]
    %v1090 = vld [vmem:[#allocation6 + $0x674] sm:$0xff]
    %v1091 = vld [vmem:[#allocation6 + $0x67c] sm:$0xff]
    %v1092 = vld [vmem:[#allocation6 + $0x684] sm:$0xff]
    %v1093 = vld [vmem:[#allocation6 + $0x68c] sm:$0xf]
    %v1094 = vld [vmem:[#allocation6 + $0x690] sm:$0xff]
    %v1095 = vld [vmem:[#allocation6 + $0x698] sm:$0xff]
    %v1096 = vld [vmem:[#allocation6 + $0x6a0] sm:$0xff]
    %v1097 = vld [vmem:[#allocation6 + $0x6a8] sm:$0xf]
    %v1098 = vld [vmem:[#allocation6 + $0x6ac] sm:$0xff]
    %v1099 = vld [vmem:[#allocation6 + $0x6b4] sm:$0xff]
    %v1100 = vld [vmem:[#allocation6 + $0x6bc] sm:$0xff]
    %v1101 = vld [vmem:[#allocation6 + $0x6c4] sm:$0xf]
    %v1102 = vld [vmem:[#allocation6 + $0x6c8] sm:$0xff]
    %v1103 = vld [vmem:[#allocation6 + $0x6d0] sm:$0xff]
    %v1104 = vld [vmem:[#allocation6 + $0x6d8] sm:$0xff]
    %v1105 = vld [vmem:[#allocation6 + $0x6e0] sm:$0xf]
    %v1106 = vld [vmem:[#allocation6 + $0x6e4] sm:$0xff]
    %v1107 = vld [vmem:[#allocation6 + $0x6ec] sm:$0xff]
    %v1108 = vld [vmem:[#allocation6 + $0x6f4] sm:$0xff]
    %v1109 = vld [vmem:[#allocation6 + $0x6fc] sm:$0xf]
    %v1110 = vld [vmem:[%s5] sm:$0xff]
    %v1112 = vperm.slane %v1110, 0
    %v1113 = vperm.slane %v1110, 1
    %v1114 = vperm.slane %v1110, 2
    %v1115 = vperm.slane %v1110, 3
    %v1116 = vperm.slane %v1110, 4
    %v1117 = vperm.slane %v1110, 5
    %v1118 = vperm.slane %v1110, 6
    %v1382 = vunpack.c.l.b16 %v854
    %v1383 = vunpack.c.h.b16 %v854
    %v1384 = vunpack.c.l.b16 %v855
    %v1385 = vunpack.c.h.b16 %v855
    %v1386 = vunpack.c.l.b16 %v856
    %v1387 = vunpack.c.h.b16 %v856
    %v1388 = vunpack.c.l.b16 %v857
    %v1389 = vunpack.c.l.b16 %v858
    %v1390 = vunpack.c.h.b16 %v858
    %v1391 = vunpack.c.l.b16 %v859
    %v1392 = vunpack.c.h.b16 %v859
    %v1393 = vunpack.c.l.b16 %v860
    %v1394 = vunpack.c.h.b16 %v860
    %v1395 = vunpack.c.l.b16 %v861
    %v1396 = vunpack.c.l.b16 %v862
    %v1397 = vunpack.c.h.b16 %v862
    %v1398 = vunpack.c.l.b16 %v863
    %v1399 = vunpack.c.h.b16 %v863
    %v1400 = vunpack.c.l.b16 %v864
    %v1401 = vunpack.c.h.b16 %v864
    %v1402 = vunpack.c.l.b16 %v865
    %v1403 = vunpack.c.l.b16 %v866
    %v1404 = vunpack.c.h.b16 %v866
    %v1405 = vunpack.c.l.b16 %v867
    %v1406 = vunpack.c.h.b16 %v867
    %v1407 = vunpack.c.l.b16 %v868
    %v1408 = vunpack.c.h.b16 %v868
    %v1409 = vunpack.c.l.b16 %v869
    %v1410 = vunpack.c.l.b16 %v870
    %v1411 = vunpack.c.h.b16 %v870
    %v1412 = vunpack.c.l.b16 %v871
    %v1413 = vunpack.c.h.b16 %v871
    %v1414 = vunpack.c.l.b16 %v872
    %v1415 = vunpack.c.h.b16 %v872
    %v1416 = vunpack.c.l.b16 %v873
    %v1417 = vunpack.c.l.b16 %v874
    %v1418 = vunpack.c.h.b16 %v874
    %v1419 = vunpack.c.l.b16 %v875
    %v1420 = vunpack.c.h.b16 %v875
    %v1421 = vunpack.c.l.b16 %v876
    %v1422 = vunpack.c.h.b16 %v876
    %v1423 = vunpack.c.l.b16 %v877
    %v1424 = vunpack.c.l.b16 %v878
    %v1425 = vunpack.c.h.b16 %v878
    %v1426 = vunpack.c.l.b16 %v879
    %v1427 = vunpack.c.h.b16 %v879
    %v1428 = vunpack.c.l.b16 %v880
    %v1429 = vunpack.c.h.b16 %v880
    %v1430 = vunpack.c.l.b16 %v881
    %v1431 = vunpack.c.l.b16 %v882
    %v1432 = vunpack.c.h.b16 %v882
    %v1433 = vunpack.c.l.b16 %v883
    %v1434 = vunpack.c.h.b16 %v883
    %v1435 = vunpack.c.l.b16 %v884
    %v1436 = vunpack.c.h.b16 %v884
    %v1437 = vunpack.c.l.b16 %v885
    %v1438 = vunpack.c.l.b16 %v886
    %v1439 = vunpack.c.h.b16 %v886
    %v1440 = vunpack.c.l.b16 %v887
    %v1441 = vunpack.c.h.b16 %v887
    %v1442 = vunpack.c.l.b16 %v888
    %v1443 = vunpack.c.h.b16 %v888
    %v1444 = vunpack.c.l.b16 %v889
    %v1445 = vunpack.c.l.b16 %v890
    %v1446 = vunpack.c.h.b16 %v890
    %v1447 = vunpack.c.l.b16 %v891
    %v1448 = vunpack.c.h.b16 %v891
    %v1449 = vunpack.c.l.b16 %v892
    %v1450 = vunpack.c.h.b16 %v892
    %v1451 = vunpack.c.l.b16 %v893
    %v1452 = vunpack.c.l.b16 %v894
    %v1453 = vunpack.c.h.b16 %v894
    %v1454 = vunpack.c.l.b16 %v895
    %v1455 = vunpack.c.h.b16 %v895
    %v1456 = vunpack.c.l.b16 %v896
    %v1457 = vunpack.c.h.b16 %v896
    %v1458 = vunpack.c.l.b16 %v897
    %v1459 = vunpack.c.l.b16 %v898
    %v1460 = vunpack.c.h.b16 %v898
    %v1461 = vunpack.c.l.b16 %v899
    %v1462 = vunpack.c.h.b16 %v899
    %v1463 = vunpack.c.l.b16 %v900
    %v1464 = vunpack.c.h.b16 %v900
    %v1465 = vunpack.c.l.b16 %v901
    %v1466 = vunpack.c.l.b16 %v902
    %v1467 = vunpack.c.h.b16 %v902
    %v1468 = vunpack.c.l.b16 %v903
    %v1469 = vunpack.c.h.b16 %v903
    %v1470 = vunpack.c.l.b16 %v904
    %v1471 = vunpack.c.h.b16 %v904
    %v1472 = vunpack.c.l.b16 %v905
    %v1473 = vunpack.c.l.b16 %v906
    %v1474 = vunpack.c.h.b16 %v906
    %v1475 = vunpack.c.l.b16 %v907
    %v1476 = vunpack.c.h.b16 %v907
    %v1477 = vunpack.c.l.b16 %v908
    %v1478 = vunpack.c.h.b16 %v908
    %v1479 = vunpack.c.l.b16 %v909
    %v1480 = vunpack.c.l.b16 %v910
    %v1481 = vunpack.c.h.b16 %v910
    %v1482 = vunpack.c.l.b16 %v911
    %v1483 = vunpack.c.h.b16 %v911
    %v1484 = vunpack.c.l.b16 %v912
    %v1485 = vunpack.c.h.b16 %v912
    %v1486 = vunpack.c.l.b16 %v913
    %v1487 = vunpack.c.l.b16 %v914
    %v1488 = vunpack.c.h.b16 %v914
    %v1489 = vunpack.c.l.b16 %v915
    %v1490 = vunpack.c.h.b16 %v915
    %v1491 = vunpack.c.l.b16 %v916
    %v1492 = vunpack.c.h.b16 %v916
    %v1493 = vunpack.c.l.b16 %v917
    %v1494 = vunpack.c.l.b16 %v918
    %v1495 = vunpack.c.h.b16 %v918
    %v1496 = vunpack.c.l.b16 %v919
    %v1497 = vunpack.c.h.b16 %v919
    %v1498 = vunpack.c.l.b16 %v920
    %v1499 = vunpack.c.h.b16 %v920
    %v1500 = vunpack.c.l.b16 %v921
    %v1501 = vunpack.c.l.b16 %v922
    %v1502 = vunpack.c.h.b16 %v922
    %v1503 = vunpack.c.l.b16 %v923
    %v1504 = vunpack.c.h.b16 %v923
    %v1505 = vunpack.c.l.b16 %v924
    %v1506 = vunpack.c.h.b16 %v924
    %v1507 = vunpack.c.l.b16 %v925
    %v1508 = vunpack.c.l.b16 %v926
    %v1509 = vunpack.c.h.b16 %v926
    %v1510 = vunpack.c.l.b16 %v927
    %v1511 = vunpack.c.h.b16 %v927
    %v1512 = vunpack.c.l.b16 %v928
    %v1513 = vunpack.c.h.b16 %v928
    %v1514 = vunpack.c.l.b16 %v929
    %v1515 = vunpack.c.l.b16 %v930
    %v1516 = vunpack.c.h.b16 %v930
    %v1517 = vunpack.c.l.b16 %v931
    %v1518 = vunpack.c.h.b16 %v931
    %v1519 = vunpack.c.l.b16 %v932
    %v1520 = vunpack.c.h.b16 %v932
    %v1521 = vunpack.c.l.b16 %v933
    %v1522 = vunpack.c.l.b16 %v934
    %v1523 = vunpack.c.h.b16 %v934
    %v1524 = vunpack.c.l.b16 %v935
    %v1525 = vunpack.c.h.b16 %v935
    %v1526 = vunpack.c.l.b16 %v936
    %v1527 = vunpack.c.h.b16 %v936
    %v1528 = vunpack.c.l.b16 %v937
    %v1529 = vunpack.c.l.b16 %v938
    %v1530 = vunpack.c.h.b16 %v938
    %v1531 = vunpack.c.l.b16 %v939
    %v1532 = vunpack.c.h.b16 %v939
    %v1533 = vunpack.c.l.b16 %v940
    %v1534 = vunpack.c.h.b16 %v940
    %v1535 = vunpack.c.l.b16 %v941
    %v1536 = vunpack.c.l.b16 %v942
    %v1537 = vunpack.c.h.b16 %v942
    %v1538 = vunpack.c.l.b16 %v943
    %v1539 = vunpack.c.h.b16 %v943
    %v1540 = vunpack.c.l.b16 %v944
    %v1541 = vunpack.c.h.b16 %v944
    %v1542 = vunpack.c.l.b16 %v945
    %v1543 = vunpack.c.l.b16 %v946
    %v1544 = vunpack.c.h.b16 %v946
    %v1545 = vunpack.c.l.b16 %v947
    %v1546 = vunpack.c.h.b16 %v947
    %v1547 = vunpack.c.l.b16 %v948
    %v1548 = vunpack.c.h.b16 %v948
    %v1549 = vunpack.c.l.b16 %v949
    %v1550 = vunpack.c.l.b16 %v950
    %v1551 = vunpack.c.h.b16 %v950
    %v1552 = vunpack.c.l.b16 %v951
    %v1553 = vunpack.c.h.b16 %v951
    %v1554 = vunpack.c.l.b16 %v952
    %v1555 = vunpack.c.h.b16 %v952
    %v1556 = vunpack.c.l.b16 %v953
    %v1557 = vunpack.c.l.b16 %v954
    %v1558 = vunpack.c.h.b16 %v954
    %v1559 = vunpack.c.l.b16 %v955
    %v1560 = vunpack.c.h.b16 %v955
    %v1561 = vunpack.c.l.b16 %v956
    %v1562 = vunpack.c.h.b16 %v956
    %v1563 = vunpack.c.l.b16 %v957
    %v1564 = vunpack.c.l.b16 %v958
    %v1565 = vunpack.c.h.b16 %v958
    %v1566 = vunpack.c.l.b16 %v959
    %v1567 = vunpack.c.h.b16 %v959
    %v1568 = vunpack.c.l.b16 %v960
    %v1569 = vunpack.c.h.b16 %v960
    %v1570 = vunpack.c.l.b16 %v961
    %v1571 = vunpack.c.l.b16 %v962
    %v1572 = vunpack.c.h.b16 %v962
    %v1573 = vunpack.c.l.b16 %v963
    %v1574 = vunpack.c.h.b16 %v963
    %v1575 = vunpack.c.l.b16 %v964
    %v1576 = vunpack.c.h.b16 %v964
    %v1577 = vunpack.c.l.b16 %v965
    %v1578 = vunpack.c.l.b16 %v966
    %v1579 = vunpack.c.h.b16 %v966
    %v1580 = vunpack.c.l.b16 %v967
    %v1581 = vunpack.c.h.b16 %v967
    %v1582 = vunpack.c.l.b16 %v968
    %v1583 = vunpack.c.h.b16 %v968
    %v1584 = vunpack.c.l.b16 %v969
    %v1585 = vunpack.c.l.b16 %v970
    %v1586 = vunpack.c.h.b16 %v970
    %v1587 = vunpack.c.l.b16 %v971
    %v1588 = vunpack.c.h.b16 %v971
    %v1589 = vunpack.c.l.b16 %v972
    %v1590 = vunpack.c.h.b16 %v972
    %v1591 = vunpack.c.l.b16 %v973
    %v1592 = vunpack.c.l.b16 %v974
    %v1593 = vunpack.c.h.b16 %v974
    %v1594 = vunpack.c.l.b16 %v975
    %v1595 = vunpack.c.h.b16 %v975
    %v1596 = vunpack.c.l.b16 %v976
    %v1597 = vunpack.c.h.b16 %v976
    %v1598 = vunpack.c.l.b16 %v977
    %v1599 = vunpack.c.l.b16 %v978
    %v1600 = vunpack.c.h.b16 %v978
    %v1601 = vunpack.c.l.b16 %v979
    %v1602 = vunpack.c.h.b16 %v979
    %v1603 = vunpack.c.l.b16 %v980
    %v1604 = vunpack.c.h.b16 %v980
    %v1605 = vunpack.c.l.b16 %v981
    %v1606 = vunpack.c.l.b16 %v982
    %v1607 = vunpack.c.h.b16 %v982
    %v1608 = vunpack.c.l.b16 %v983
    %v1609 = vunpack.c.h.b16 %v983
    %v1610 = vunpack.c.l.b16 %v984
    %v1611 = vunpack.c.h.b16 %v984
    %v1612 = vunpack.c.l.b16 %v985
    %v1613 = vunpack.c.l.b16 %v986
    %v1614 = vunpack.c.h.b16 %v986
    %v1615 = vunpack.c.l.b16 %v987
    %v1616 = vunpack.c.h.b16 %v987
    %v1617 = vunpack.c.l.b16 %v988
    %v1618 = vunpack.c.h.b16 %v988
    %v1619 = vunpack.c.l.b16 %v989
    %v1620 = vunpack.c.l.b16 %v990
    %v1621 = vunpack.c.h.b16 %v990
    %v1622 = vunpack.c.l.b16 %v991
    %v1623 = vunpack.c.h.b16 %v991
    %v1624 = vunpack.c.l.b16 %v992
    %v1625 = vunpack.c.h.b16 %v992
    %v1626 = vunpack.c.l.b16 %v993
    %v1627 = vunpack.c.l.b16 %v994
    %v1628 = vunpack.c.h.b16 %v994
    %v1629 = vunpack.c.l.b16 %v995
    %v1630 = vunpack.c.h.b16 %v995
    %v1631 = vunpack.c.l.b16 %v996
    %v1632 = vunpack.c.h.b16 %v996
    %v1633 = vunpack.c.l.b16 %v997
    %v1634 = vunpack.c.l.b16 %v998
    %v1635 = vunpack.c.h.b16 %v998
    %v1636 = vunpack.c.l.b16 %v999
    %v1637 = vunpack.c.h.b16 %v999
    %v1638 = vunpack.c.l.b16 %v1000
    %v1639 = vunpack.c.h.b16 %v1000
    %v1640 = vunpack.c.l.b16 %v1001
    %v1641 = vunpack.c.l.b16 %v1002
    %v1642 = vunpack.c.h.b16 %v1002
    %v1643 = vunpack.c.l.b16 %v1003
    %v1644 = vunpack.c.h.b16 %v1003
    %v1645 = vunpack.c.l.b16 %v1004
    %v1646 = vunpack.c.h.b16 %v1004
    %v1647 = vunpack.c.l.b16 %v1005
    %v1648 = vunpack.c.l.b16 %v1006
    %v1649 = vunpack.c.h.b16 %v1006
    %v1650 = vunpack.c.l.b16 %v1007
    %v1651 = vunpack.c.h.b16 %v1007
    %v1652 = vunpack.c.l.b16 %v1008
    %v1653 = vunpack.c.h.b16 %v1008
    %v1654 = vunpack.c.l.b16 %v1009
    %v1655 = vunpack.c.l.b16 %v1010
    %v1656 = vunpack.c.h.b16 %v1010
    %v1657 = vunpack.c.l.b16 %v1011
    %v1658 = vunpack.c.h.b16 %v1011
    %v1659 = vunpack.c.l.b16 %v1012
    %v1660 = vunpack.c.h.b16 %v1012
    %v1661 = vunpack.c.l.b16 %v1013
    %v1662 = vunpack.c.l.b16 %v1014
    %v1663 = vunpack.c.h.b16 %v1014
    %v1664 = vunpack.c.l.b16 %v1015
    %v1665 = vunpack.c.h.b16 %v1015
    %v1666 = vunpack.c.l.b16 %v1016
    %v1667 = vunpack.c.h.b16 %v1016
    %v1668 = vunpack.c.l.b16 %v1017
    %v1669 = vunpack.c.l.b16 %v1018
    %v1670 = vunpack.c.h.b16 %v1018
    %v1671 = vunpack.c.l.b16 %v1019
    %v1672 = vunpack.c.h.b16 %v1019
    %v1673 = vunpack.c.l.b16 %v1020
    %v1674 = vunpack.c.h.b16 %v1020
    %v1675 = vunpack.c.l.b16 %v1021
    %v1676 = vunpack.c.l.b16 %v1022
    %v1677 = vunpack.c.h.b16 %v1022
    %v1678 = vunpack.c.l.b16 %v1023
    %v1679 = vunpack.c.h.b16 %v1023
    %v1680 = vunpack.c.l.b16 %v1024
    %v1681 = vunpack.c.h.b16 %v1024
    %v1682 = vunpack.c.l.b16 %v1025
    %v1683 = vunpack.c.l.b16 %v1026
    %v1684 = vunpack.c.h.b16 %v1026
    %v1685 = vunpack.c.l.b16 %v1027
    %v1686 = vunpack.c.h.b16 %v1027
    %v1687 = vunpack.c.l.b16 %v1028
    %v1688 = vunpack.c.h.b16 %v1028
    %v1689 = vunpack.c.l.b16 %v1029
    %v1690 = vunpack.c.l.b16 %v1030
    %v1691 = vunpack.c.h.b16 %v1030
    %v1692 = vunpack.c.l.b16 %v1031
    %v1693 = vunpack.c.h.b16 %v1031
    %v1694 = vunpack.c.l.b16 %v1032
    %v1695 = vunpack.c.h.b16 %v1032
    %v1696 = vunpack.c.l.b16 %v1033
    %v1697 = vunpack.c.l.b16 %v1034
    %v1698 = vunpack.c.h.b16 %v1034
    %v1699 = vunpack.c.l.b16 %v1035
    %v1700 = vunpack.c.h.b16 %v1035
    %v1701 = vunpack.c.l.b16 %v1036
    %v1702 = vunpack.c.h.b16 %v1036
    %v1703 = vunpack.c.l.b16 %v1037
    %v1704 = vunpack.c.l.b16 %v1038
    %v1705 = vunpack.c.h.b16 %v1038
    %v1706 = vunpack.c.l.b16 %v1039
    %v1707 = vunpack.c.h.b16 %v1039
    %v1708 = vunpack.c.l.b16 %v1040
    %v1709 = vunpack.c.h.b16 %v1040
    %v1710 = vunpack.c.l.b16 %v1041
    %v1711 = vunpack.c.l.b16 %v1042
    %v1712 = vunpack.c.h.b16 %v1042
    %v1713 = vunpack.c.l.b16 %v1043
    %v1714 = vunpack.c.h.b16 %v1043
    %v1715 = vunpack.c.l.b16 %v1044
    %v1716 = vunpack.c.h.b16 %v1044
    %v1717 = vunpack.c.l.b16 %v1045
    %v1718 = vunpack.c.l.b16 %v1046
    %v1719 = vunpack.c.h.b16 %v1046
    %v1720 = vunpack.c.l.b16 %v1047
    %v1721 = vunpack.c.h.b16 %v1047
    %v1722 = vunpack.c.l.b16 %v1048
    %v1723 = vunpack.c.h.b16 %v1048
    %v1724 = vunpack.c.l.b16 %v1049
    %v1725 = vunpack.c.l.b16 %v1050
    %v1726 = vunpack.c.h.b16 %v1050
    %v1727 = vunpack.c.l.b16 %v1051
    %v1728 = vunpack.c.h.b16 %v1051
    %v1729 = vunpack.c.l.b16 %v1052
    %v1730 = vunpack.c.h.b16 %v1052
    %v1731 = vunpack.c.l.b16 %v1053
    %v1732 = vunpack.c.l.b16 %v1054
    %v1733 = vunpack.c.h.b16 %v1054
    %v1734 = vunpack.c.l.b16 %v1055
    %v1735 = vunpack.c.h.b16 %v1055
    %v1736 = vunpack.c.l.b16 %v1056
    %v1737 = vunpack.c.h.b16 %v1056
    %v1738 = vunpack.c.l.b16 %v1057
    %v1739 = vunpack.c.l.b16 %v1058
    %v1740 = vunpack.c.h.b16 %v1058
    %v1741 = vunpack.c.l.b16 %v1059
    %v1742 = vunpack.c.h.b16 %v1059
    %v1743 = vunpack.c.l.b16 %v1060
    %v1744 = vunpack.c.h.b16 %v1060
    %v1745 = vunpack.c.l.b16 %v1061
    %v1746 = vunpack.c.l.b16 %v1062
    %v1747 = vunpack.c.h.b16 %v1062
    %v1748 = vunpack.c.l.b16 %v1063
    %v1749 = vunpack.c.h.b16 %v1063
    %v1750 = vunpack.c.l.b16 %v1064
    %v1751 = vunpack.c.h.b16 %v1064
    %v1752 = vunpack.c.l.b16 %v1065
    %v1753 = vunpack.c.l.b16 %v1066
    %v1754 = vunpack.c.h.b16 %v1066
    %v1755 = vunpack.c.l.b16 %v1067
    %v1756 = vunpack.c.h.b16 %v1067
    %v1757 = vunpack.c.l.b16 %v1068
    %v1758 = vunpack.c.h.b16 %v1068
    %v1759 = vunpack.c.l.b16 %v1069
    %v1760 = vunpack.c.l.b16 %v1070
    %v1761 = vunpack.c.h.b16 %v1070
    %v1762 = vunpack.c.l.b16 %v1071
    %v1763 = vunpack.c.h.b16 %v1071
    %v1764 = vunpack.c.l.b16 %v1072
    %v1765 = vunpack.c.h.b16 %v1072
    %v1766 = vunpack.c.l.b16 %v1073
    %v1767 = vunpack.c.l.b16 %v1074
    %v1768 = vunpack.c.h.b16 %v1074
    %v1769 = vunpack.c.l.b16 %v1075
    %v1770 = vunpack.c.h.b16 %v1075
    %v1771 = vunpack.c.l.b16 %v1076
    %v1772 = vunpack.c.h.b16 %v1076
    %v1773 = vunpack.c.l.b16 %v1077
    %v1774 = vunpack.c.l.b16 %v1078
    %v1775 = vunpack.c.h.b16 %v1078
    %v1776 = vunpack.c.l.b16 %v1079
    %v1777 = vunpack.c.h.b16 %v1079
    %v1778 = vunpack.c.l.b16 %v1080
    %v1779 = vunpack.c.h.b16 %v1080
    %v1780 = vunpack.c.l.b16 %v1081
    %v1781 = vunpack.c.l.b16 %v1082
    %v1782 = vunpack.c.h.b16 %v1082
    %v1783 = vunpack.c.l.b16 %v1083
    %v1784 = vunpack.c.h.b16 %v1083
    %v1785 = vunpack.c.l.b16 %v1084
    %v1786 = vunpack.c.h.b16 %v1084
    %v1787 = vunpack.c.l.b16 %v1085
    %v1788 = vunpack.c.l.b16 %v1086
    %v1789 = vunpack.c.h.b16 %v1086
    %v1790 = vunpack.c.l.b16 %v1087
    %v1791 = vunpack.c.h.b16 %v1087
    %v1792 = vunpack.c.l.b16 %v1088
    %v1793 = vunpack.c.h.b16 %v1088
    %v1794 = vunpack.c.l.b16 %v1089
    %v1795 = vunpack.c.l.b16 %v1090
    %v1796 = vunpack.c.h.b16 %v1090
    %v1797 = vunpack.c.l.b16 %v1091
    %v1798 = vunpack.c.h.b16 %v1091
    %v1799 = vunpack.c.l.b16 %v1092
    %v1800 = vunpack.c.h.b16 %v1092
    %v1801 = vunpack.c.l.b16 %v1093
    %v1802 = vunpack.c.l.b16 %v1094
    %v1803 = vunpack.c.h.b16 %v1094
    %v1804 = vunpack.c.l.b16 %v1095
    %v1805 = vunpack.c.h.b16 %v1095
    %v1806 = vunpack.c.l.b16 %v1096
    %v1807 = vunpack.c.h.b16 %v1096
    %v1808 = vunpack.c.l.b16 %v1097
    %v1809 = vunpack.c.l.b16 %v1098
    %v1810 = vunpack.c.h.b16 %v1098
    %v1811 = vunpack.c.l.b16 %v1099
    %v1812 = vunpack.c.h.b16 %v1099
    %v1813 = vunpack.c.l.b16 %v1100
    %v1814 = vunpack.c.h.b16 %v1100
    %v1815 = vunpack.c.l.b16 %v1101
    %v1816 = vunpack.c.l.b16 %v1102
    %v1817 = vunpack.c.h.b16 %v1102
    %v1818 = vunpack.c.l.b16 %v1103
    %v1819 = vunpack.c.h.b16 %v1103
    %v1820 = vunpack.c.l.b16 %v1104
    %v1821 = vunpack.c.h.b16 %v1104
    %v1822 = vunpack.c.l.b16 %v1105
    %v1823 = vunpack.c.l.b16 %v1106
    %v1824 = vunpack.c.h.b16 %v1106
    %v1825 = vunpack.c.l.b16 %v1107
    %v1826 = vunpack.c.h.b16 %v1107
    %v1827 = vunpack.c.l.b16 %v1108
    %v1828 = vunpack.c.h.b16 %v1108
    %v1829 = vunpack.c.l.b16 %v1109
    %v1830 = vpack.c.b16 %v1389, %v1382
    %v1831 = vpack.c.b16 %v1390, %v1383
    %v1832 = vpack.c.b16 %v1391, %v1384
    %v1833 = vpack.c.b16 %v1392, %v1385
    %v1834 = vpack.c.b16 %v1393, %v1386
    %v1835 = vpack.c.b16 %v1394, %v1387
    %v1836 = vpack.c.b16 %v1395, %v1388
    %v1837 = vpack.c.b16 %v1403, %v1396
    %v1838 = vpack.c.b16 %v1404, %v1397
    %v1839 = vpack.c.b16 %v1405, %v1398
    %v1840 = vpack.c.b16 %v1406, %v1399
    %v1841 = vpack.c.b16 %v1407, %v1400
    %v1842 = vpack.c.b16 %v1408, %v1401
    %v1843 = vpack.c.b16 %v1409, %v1402
    %v1844 = vpack.c.b16 %v1417, %v1410
    %v1845 = vpack.c.b16 %v1418, %v1411
    %v1846 = vpack.c.b16 %v1419, %v1412
    %v1847 = vpack.c.b16 %v1420, %v1413
    %v1848 = vpack.c.b16 %v1421, %v1414
    %v1849 = vpack.c.b16 %v1422, %v1415
    %v1850 = vpack.c.b16 %v1423, %v1416
    %v1851 = vpack.c.b16 %v1431, %v1424
    %v1852 = vpack.c.b16 %v1432, %v1425
    %v1853 = vpack.c.b16 %v1433, %v1426
    %v1854 = vpack.c.b16 %v1434, %v1427
    %v1855 = vpack.c.b16 %v1435, %v1428
    %v1856 = vpack.c.b16 %v1436, %v1429
    %v1857 = vpack.c.b16 %v1437, %v1430
    %v1858 = vpack.c.b16 %v1445, %v1438
    %v1859 = vpack.c.b16 %v1446, %v1439
    %v1860 = vpack.c.b16 %v1447, %v1440
    %v1861 = vpack.c.b16 %v1448, %v1441
    %v1862 = vpack.c.b16 %v1449, %v1442
    %v1863 = vpack.c.b16 %v1450, %v1443
    %v1864 = vpack.c.b16 %v1451, %v1444
    %v1865 = vpack.c.b16 %v1459, %v1452
    %v1866 = vpack.c.b16 %v1460, %v1453
    %v1867 = vpack.c.b16 %v1461, %v1454
    %v1868 = vpack.c.b16 %v1462, %v1455
    %v1869 = vpack.c.b16 %v1463, %v1456
    %v1870 = vpack.c.b16 %v1464, %v1457
    %v1871 = vpack.c.b16 %v1465, %v1458
    %v1872 = vpack.c.b16 %v1473, %v1466
    %v1873 = vpack.c.b16 %v1474, %v1467
    %v1874 = vpack.c.b16 %v1475, %v1468
    %v1875 = vpack.c.b16 %v1476, %v1469
    %v1876 = vpack.c.b16 %v1477, %v1470
    %v1877 = vpack.c.b16 %v1478, %v1471
    %v1878 = vpack.c.b16 %v1479, %v1472
    %v1879 = vpack.c.b16 %v1487, %v1480
    %v1880 = vpack.c.b16 %v1488, %v1481
    %v1881 = vpack.c.b16 %v1489, %v1482
    %v1882 = vpack.c.b16 %v1490, %v1483
    %v1883 = vpack.c.b16 %v1491, %v1484
    %v1884 = vpack.c.b16 %v1492, %v1485
    %v1885 = vpack.c.b16 %v1493, %v1486
    %v1886 = vpack.c.b16 %v1501, %v1494
    %v1887 = vpack.c.b16 %v1502, %v1495
    %v1888 = vpack.c.b16 %v1503, %v1496
    %v1889 = vpack.c.b16 %v1504, %v1497
    %v1890 = vpack.c.b16 %v1505, %v1498
    %v1891 = vpack.c.b16 %v1506, %v1499
    %v1892 = vpack.c.b16 %v1507, %v1500
    %v1893 = vpack.c.b16 %v1515, %v1508
    %v1894 = vpack.c.b16 %v1516, %v1509
    %v1895 = vpack.c.b16 %v1517, %v1510
    %v1896 = vpack.c.b16 %v1518, %v1511
    %v1897 = vpack.c.b16 %v1519, %v1512
    %v1898 = vpack.c.b16 %v1520, %v1513
    %v1899 = vpack.c.b16 %v1521, %v1514
    %v1900 = vpack.c.b16 %v1529, %v1522
    %v1901 = vpack.c.b16 %v1530, %v1523
    %v1902 = vpack.c.b16 %v1531, %v1524
    %v1903 = vpack.c.b16 %v1532, %v1525
    %v1904 = vpack.c.b16 %v1533, %v1526
    %v1905 = vpack.c.b16 %v1534, %v1527
    %v1906 = vpack.c.b16 %v1535, %v1528
    %v1907 = vpack.c.b16 %v1543, %v1536
    %v1908 = vpack.c.b16 %v1544, %v1537
    %v1909 = vpack.c.b16 %v1545, %v1538
    %v1910 = vpack.c.b16 %v1546, %v1539
    %v1911 = vpack.c.b16 %v1547, %v1540
    %v1912 = vpack.c.b16 %v1548, %v1541
    %v1913 = vpack.c.b16 %v1549, %v1542
    %v1914 = vpack.c.b16 %v1557, %v1550
    %v1915 = vpack.c.b16 %v1558, %v1551
    %v1916 = vpack.c.b16 %v1559, %v1552
    %v1917 = vpack.c.b16 %v1560, %v1553
    %v1918 = vpack.c.b16 %v1561, %v1554
    %v1919 = vpack.c.b16 %v1562, %v1555
    %v1920 = vpack.c.b16 %v1563, %v1556
    %v1921 = vpack.c.b16 %v1571, %v1564
    %v1922 = vpack.c.b16 %v1572, %v1565
    %v1923 = vpack.c.b16 %v1573, %v1566
    %v1924 = vpack.c.b16 %v1574, %v1567
    %v1925 = vpack.c.b16 %v1575, %v1568
    %v1926 = vpack.c.b16 %v1576, %v1569
    %v1927 = vpack.c.b16 %v1577, %v1570
    %v1928 = vpack.c.b16 %v1585, %v1578
    %v1929 = vpack.c.b16 %v1586, %v1579
    %v1930 = vpack.c.b16 %v1587, %v1580
    %v1931 = vpack.c.b16 %v1588, %v1581
    %v1932 = vpack.c.b16 %v1589, %v1582
    %v1933 = vpack.c.b16 %v1590, %v1583
    %v1934 = vpack.c.b16 %v1591, %v1584
    %v1935 = vpack.c.b16 %v1599, %v1592
    %v1936 = vpack.c.b16 %v1600, %v1593
    %v1937 = vpack.c.b16 %v1601, %v1594
    %v1938 = vpack.c.b16 %v1602, %v1595
    %v1939 = vpack.c.b16 %v1603, %v1596
    %v1940 = vpack.c.b16 %v1604, %v1597
    %v1941 = vpack.c.b16 %v1605, %v1598
    %v1942 = vpack.c.b16 %v1613, %v1606
    %v1943 = vpack.c.b16 %v1614, %v1607
    %v1944 = vpack.c.b16 %v1615, %v1608
    %v1945 = vpack.c.b16 %v1616, %v1609
    %v1946 = vpack.c.b16 %v1617, %v1610
    %v1947 = vpack.c.b16 %v1618, %v1611
    %v1948 = vpack.c.b16 %v1619, %v1612
    %v1949 = vpack.c.b16 %v1627, %v1620
    %v1950 = vpack.c.b16 %v1628, %v1621
    %v1951 = vpack.c.b16 %v1629, %v1622
    %v1952 = vpack.c.b16 %v1630, %v1623
    %v1953 = vpack.c.b16 %v1631, %v1624
    %v1954 = vpack.c.b16 %v1632, %v1625
    %v1955 = vpack.c.b16 %v1633, %v1626
    %v1956 = vpack.c.b16 %v1641, %v1634
    %v1957 = vpack.c.b16 %v1642, %v1635
    %v1958 = vpack.c.b16 %v1643, %v1636
    %v1959 = vpack.c.b16 %v1644, %v1637
    %v1960 = vpack.c.b16 %v1645, %v1638
    %v1961 = vpack.c.b16 %v1646, %v1639
    %v1962 = vpack.c.b16 %v1647, %v1640
    %v1963 = vpack.c.b16 %v1655, %v1648
    %v1964 = vpack.c.b16 %v1656, %v1649
    %v1965 = vpack.c.b16 %v1657, %v1650
    %v1966 = vpack.c.b16 %v1658, %v1651
    %v1967 = vpack.c.b16 %v1659, %v1652
    %v1968 = vpack.c.b16 %v1660, %v1653
    %v1969 = vpack.c.b16 %v1661, %v1654
    %v1970 = vpack.c.b16 %v1669, %v1662
    %v1971 = vpack.c.b16 %v1670, %v1663
    %v1972 = vpack.c.b16 %v1671, %v1664
    %v1973 = vpack.c.b16 %v1672, %v1665
    %v1974 = vpack.c.b16 %v1673, %v1666
    %v1975 = vpack.c.b16 %v1674, %v1667
    %v1976 = vpack.c.b16 %v1675, %v1668
    %v1977 = vpack.c.b16 %v1683, %v1676
    %v1978 = vpack.c.b16 %v1684, %v1677
    %v1979 = vpack.c.b16 %v1685, %v1678
    %v1980 = vpack.c.b16 %v1686, %v1679
    %v1981 = vpack.c.b16 %v1687, %v1680
    %v1982 = vpack.c.b16 %v1688, %v1681
    %v1983 = vpack.c.b16 %v1689, %v1682
    %v1984 = vpack.c.b16 %v1697, %v1690
    %v1985 = vpack.c.b16 %v1698, %v1691
    %v1986 = vpack.c.b16 %v1699, %v1692
    %v1987 = vpack.c.b16 %v1700, %v1693
    %v1988 = vpack.c.b16 %v1701, %v1694
    %v1989 = vpack.c.b16 %v1702, %v1695
    %v1990 = vpack.c.b16 %v1703, %v1696
    %v1991 = vpack.c.b16 %v1711, %v1704
    %v1992 = vpack.c.b16 %v1712, %v1705
    %v1993 = vpack.c.b16 %v1713, %v1706
    %v1994 = vpack.c.b16 %v1714, %v1707
    %v1995 = vpack.c.b16 %v1715, %v1708
    %v1996 = vpack.c.b16 %v1716, %v1709
    %v1997 = vpack.c.b16 %v1717, %v1710
    %v1998 = vpack.c.b16 %v1725, %v1718
    %v1999 = vpack.c.b16 %v1726, %v1719
    %v2000 = vpack.c.b16 %v1727, %v1720
    %v2001 = vpack.c.b16 %v1728, %v1721
    %v2002 = vpack.c.b16 %v1729, %v1722
    %v2003 = vpack.c.b16 %v1730, %v1723
    %v2004 = vpack.c.b16 %v1731, %v1724
    %v2005 = vpack.c.b16 %v1739, %v1732
    %v2006 = vpack.c.b16 %v1740, %v1733
    %v2007 = vpack.c.b16 %v1741, %v1734
    %v2008 = vpack.c.b16 %v1742, %v1735
    %v2009 = vpack.c.b16 %v1743, %v1736
    %v2010 = vpack.c.b16 %v1744, %v1737
    %v2011 = vpack.c.b16 %v1745, %v1738
    %v2012 = vpack.c.b16 %v1753, %v1746
    %v2013 = vpack.c.b16 %v1754, %v1747
    %v2014 = vpack.c.b16 %v1755, %v1748
    %v2015 = vpack.c.b16 %v1756, %v1749
    %v2016 = vpack.c.b16 %v1757, %v1750
    %v2017 = vpack.c.b16 %v1758, %v1751
    %v2018 = vpack.c.b16 %v1759, %v1752
    %v2019 = vpack.c.b16 %v1767, %v1760
    %v2020 = vpack.c.b16 %v1768, %v1761
    %v2021 = vpack.c.b16 %v1769, %v1762
    %v2022 = vpack.c.b16 %v1770, %v1763
    %v2023 = vpack.c.b16 %v1771, %v1764
    %v2024 = vpack.c.b16 %v1772, %v1765
    %v2025 = vpack.c.b16 %v1773, %v1766
    %v2026 = vpack.c.b16 %v1781, %v1774
    %v2027 = vpack.c.b16 %v1782, %v1775
    %v2028 = vpack.c.b16 %v1783, %v1776
    %v2029 = vpack.c.b16 %v1784, %v1777
    %v2030 = vpack.c.b16 %v1785, %v1778
    %v2031 = vpack.c.b16 %v1786, %v1779
    %v2032 = vpack.c.b16 %v1787, %v1780
    %v2033 = vpack.c.b16 %v1795, %v1788
    %v2034 = vpack.c.b16 %v1796, %v1789
    %v2035 = vpack.c.b16 %v1797, %v1790
    %v2036 = vpack.c.b16 %v1798, %v1791
    %v2037 = vpack.c.b16 %v1799, %v1792
    %v2038 = vpack.c.b16 %v1800, %v1793
    %v2039 = vpack.c.b16 %v1801, %v1794
    %v2040 = vpack.c.b16 %v1809, %v1802
    %v2041 = vpack.c.b16 %v1810, %v1803
    %v2042 = vpack.c.b16 %v1811, %v1804
    %v2043 = vpack.c.b16 %v1812, %v1805
    %v2044 = vpack.c.b16 %v1813, %v1806
    %v2045 = vpack.c.b16 %v1814, %v1807
    %v2046 = vpack.c.b16 %v1815, %v1808
    %v2047 = vpack.c.b16 %v1823, %v1816
    %v2048 = vpack.c.b16 %v1824, %v1817
    %v2049 = vpack.c.b16 %v1825, %v1818
    %v2050 = vpack.c.b16 %v1826, %v1819
    %v2051 = vpack.c.b16 %v1827, %v1820
    %v2052 = vpack.c.b16 %v1828, %v1821
    %v2053 = vpack.c.b16 %v1829, %v1822
    %2278 = vmatpush.bf16.msra.mxu0 %v1879
    %2279 = vmatpush.bf16.msra.mxu0 %v1872
    %2280 = vmatpush.bf16.msra.mxu0 %v1865
    %2281 = vmatpush.bf16.msra.mxu0 %v1858
    %2282 = vmatpush.bf16.msra.mxu0 %v1851
    %2283 = vmatpush.bf16.msra.mxu0 %v1844
    %2284 = vmatpush.bf16.msra.mxu0 %v1837
    %2285 = vmatpush.bf16.msra.mxu0 %v1830
    %2286 = vmatmul.bf16.gmra.mxu0 %v850
    %v2287 = vpop.f32.mrf.mxu0
    %v2288 = vadd.f32 %v1112, %v2287
    %v2289 = vpop.f32.mrf.mxu0
    %v2290 = vadd.f32 %v1112, %v2289
    %2291 = vdwg.mxu0
    %2292 = vmatpush.bf16.msra.mxu0 %v1935
    %2293 = vmatpush.bf16.msra.mxu0 %v1928
    %2294 = vmatpush.bf16.msra.mxu0 %v1921
    %2295 = vmatpush.bf16.msra.mxu0 %v1914
    %2296 = vmatpush.bf16.msra.mxu0 %v1907
    %2297 = vmatpush.bf16.msra.mxu0 %v1900
    %2298 = vmatpush.bf16.msra.mxu0 %v1893
    %2299 = vmatpush.bf16.msra.mxu0 %v1886
    %2300 = vmatmul.bf16.gmra.mxu0 %v851
    %v2301 = vpop.f32.mrf.mxu0
    %v2302 = vadd.f32 %v2288, %v2301
    %v2303 = vpop.f32.mrf.mxu0
    %v2304 = vadd.f32 %v2290, %v2303
    %2305 = vdwg.mxu0
    %2306 = vmatpush.bf16.msra.mxu0 %v1991
    %2307 = vmatpush.bf16.msra.mxu0 %v1984
    %2308 = vmatpush.bf16.msra.mxu0 %v1977
    %2309 = vmatpush.bf16.msra.mxu0 %v1970
    %2310 = vmatpush.bf16.msra.mxu0 %v1963
    %2311 = vmatpush.bf16.msra.mxu0 %v1956
    %2312 = vmatpush.bf16.msra.mxu0 %v1949
    %2313 = vmatpush.bf16.msra.mxu0 %v1942
    %2314 = vmatmul.bf16.gmra.mxu0 %v852
    %v2315 = vpop.f32.mrf.mxu0
    %v2316 = vadd.f32 %v2302, %v2315
    %v2317 = vpop.f32.mrf.mxu0
    %v2318 = vadd.f32 %v2304, %v2317
    %2319 = vdwg.mxu0
    %2320 = vmatpush.bf16.msra.mxu0 %v2047
    %2321 = vmatpush.bf16.msra.mxu0 %v2040
    %2322 = vmatpush.bf16.msra.mxu0 %v2033
    %2323 = vmatpush.bf16.msra.mxu0 %v2026
    %2324 = vmatpush.bf16.msra.mxu0 %v2019
    %2325 = vmatpush.bf16.msra.mxu0 %v2012
    %2326 = vmatpush.bf16.msra.mxu0 %v2005
    %2327 = vmatpush.bf16.msra.mxu0 %v1998
    %2328 = vmatmul.bf16.gmra.mxu0 %v853
    %v2329 = vpop.f32.mrf.mxu0
    %v2330 = vadd.f32 %v2316, %v2329
    %v2331 = vpop.f32.mrf.mxu0
    %v2332 = vadd.f32 %v2318, %v2331
    %2333 = vdwg.mxu0
    %2334 = vmatpush.bf16.msra.mxu0 %v1880
    %2335 = vmatpush.bf16.msra.mxu0 %v1873
    %2336 = vmatpush.bf16.msra.mxu0 %v1866
    %2337 = vmatpush.bf16.msra.mxu0 %v1859
    %2338 = vmatpush.bf16.msra.mxu0 %v1852
    %2339 = vmatpush.bf16.msra.mxu0 %v1845
    %2340 = vmatpush.bf16.msra.mxu0 %v1838
    %2341 = vmatpush.bf16.msra.mxu0 %v1831
    %2342 = vmatmul.bf16.gmra.mxu0 %v850
    %v2343 = vpop.f32.mrf.mxu0
    %v2344 = vadd.f32 %v1113, %v2343
    %v2345 = vpop.f32.mrf.mxu0
    %v2346 = vadd.f32 %v1113, %v2345
    %2347 = vdwg.mxu0
    %2348 = vmatpush.bf16.msra.mxu0 %v1936
    %2349 = vmatpush.bf16.msra.mxu0 %v1929
    %2350 = vmatpush.bf16.msra.mxu0 %v1922
    %2351 = vmatpush.bf16.msra.mxu0 %v1915
    %2352 = vmatpush.bf16.msra.mxu0 %v1908
    %2353 = vmatpush.bf16.msra.mxu0 %v1901
    %2354 = vmatpush.bf16.msra.mxu0 %v1894
    %2355 = vmatpush.bf16.msra.mxu0 %v1887
    %2356 = vmatmul.bf16.gmra.mxu0 %v851
    %v2357 = vpop.f32.mrf.mxu0
    %v2358 = vadd.f32 %v2344, %v2357
    %v2359 = vpop.f32.mrf.mxu0
    %v2360 = vadd.f32 %v2346, %v2359
    %2361 = vdwg.mxu0
    %2362 = vmatpush.bf16.msra.mxu0 %v1992
    %2363 = vmatpush.bf16.msra.mxu0 %v1985
    %2364 = vmatpush.bf16.msra.mxu0 %v1978
    %2365 = vmatpush.bf16.msra.mxu0 %v1971
    %2366 = vmatpush.bf16.msra.mxu0 %v1964
    %2367 = vmatpush.bf16.msra.mxu0 %v1957
    %2368 = vmatpush.bf16.msra.mxu0 %v1950
    %2369 = vmatpush.bf16.msra.mxu0 %v1943
    %2370 = vmatmul.bf16.gmra.mxu0 %v852
    %v2371 = vpop.f32.mrf.mxu0
    %v2372 = vadd.f32 %v2358, %v2371
    %v2373 = vpop.f32.mrf.mxu0
    %v2374 = vadd.f32 %v2360, %v2373
    %2375 = vdwg.mxu0
    %2376 = vmatpush.bf16.msra.mxu0 %v2048
    %2377 = vmatpush.bf16.msra.mxu0 %v2041
    %2378 = vmatpush.bf16.msra.mxu0 %v2034
    %2379 = vmatpush.bf16.msra.mxu0 %v2027
    %2380 = vmatpush.bf16.msra.mxu0 %v2020
    %2381 = vmatpush.bf16.msra.mxu0 %v2013
    %2382 = vmatpush.bf16.msra.mxu0 %v2006
    %2383 = vmatpush.bf16.msra.mxu0 %v1999
    %2384 = vmatmul.bf16.gmra.mxu0 %v853
    %v2385 = vpop.f32.mrf.mxu0
    %v2386 = vadd.f32 %v2372, %v2385
    %v2387 = vpop.f32.mrf.mxu0
    %v2388 = vadd.f32 %v2374, %v2387
    %2389 = vdwg.mxu0
    %2390 = vmatpush.bf16.msra.mxu0 %v1881
    %2391 = vmatpush.bf16.msra.mxu0 %v1874
    %2392 = vmatpush.bf16.msra.mxu0 %v1867
    %2393 = vmatpush.bf16.msra.mxu0 %v1860
    %2394 = vmatpush.bf16.msra.mxu0 %v1853
    %2395 = vmatpush.bf16.msra.mxu0 %v1846
    %2396 = vmatpush.bf16.msra.mxu0 %v1839
    %2397 = vmatpush.bf16.msra.mxu0 %v1832
    %2398 = vmatmul.bf16.gmra.mxu0 %v850
    %v2399 = vpop.f32.mrf.mxu0
    %v2400 = vadd.f32 %v1114, %v2399
    %v2401 = vpop.f32.mrf.mxu0
    %v2402 = vadd.f32 %v1114, %v2401
    %2403 = vdwg.mxu0
    %2404 = vmatpush.bf16.msra.mxu0 %v1937
    %2405 = vmatpush.bf16.msra.mxu0 %v1930
    %2406 = vmatpush.bf16.msra.mxu0 %v1923
    %2407 = vmatpush.bf16.msra.mxu0 %v1916
    %2408 = vmatpush.bf16.msra.mxu0 %v1909
    %2409 = vmatpush.bf16.msra.mxu0 %v1902
    %2410 = vmatpush.bf16.msra.mxu0 %v1895
    %2411 = vmatpush.bf16.msra.mxu0 %v1888
    %2412 = vmatmul.bf16.gmra.mxu0 %v851
    %v2413 = vpop.f32.mrf.mxu0
    %v2414 = vadd.f32 %v2400, %v2413
    %v2415 = vpop.f32.mrf.mxu0
    %v2416 = vadd.f32 %v2402, %v2415
    %2417 = vdwg.mxu0
    %2418 = vmatpush.bf16.msra.mxu0 %v1993
    %2419 = vmatpush.bf16.msra.mxu0 %v1986
    %2420 = vmatpush.bf16.msra.mxu0 %v1979
    %2421 = vmatpush.bf16.msra.mxu0 %v1972
    %2422 = vmatpush.bf16.msra.mxu0 %v1965
    %2423 = vmatpush.bf16.msra.mxu0 %v1958
    %2424 = vmatpush.bf16.msra.mxu0 %v1951
    %2425 = vmatpush.bf16.msra.mxu0 %v1944
    %2426 = vmatmul.bf16.gmra.mxu0 %v852
    %v2427 = vpop.f32.mrf.mxu0
    %v2428 = vadd.f32 %v2414, %v2427
    %v2429 = vpop.f32.mrf.mxu0
    %v2430 = vadd.f32 %v2416, %v2429
    %2431 = vdwg.mxu0
    %2432 = vmatpush.bf16.msra.mxu0 %v2049
    %2433 = vmatpush.bf16.msra.mxu0 %v2042
    %2434 = vmatpush.bf16.msra.mxu0 %v2035
    %2435 = vmatpush.bf16.msra.mxu0 %v2028
    %2436 = vmatpush.bf16.msra.mxu0 %v2021
    %2437 = vmatpush.bf16.msra.mxu0 %v2014
    %2438 = vmatpush.bf16.msra.mxu0 %v2007
    %2439 = vmatpush.bf16.msra.mxu0 %v2000
    %2440 = vmatmul.bf16.gmra.mxu0 %v853
    %v2441 = vpop.f32.mrf.mxu0
    %v2442 = vadd.f32 %v2428, %v2441
    %v2443 = vpop.f32.mrf.mxu0
    %v2444 = vadd.f32 %v2430, %v2443
    %2445 = vdwg.mxu0
    %2446 = vmatpush.bf16.msra.mxu0 %v1882
    %2447 = vmatpush.bf16.msra.mxu0 %v1875
    %2448 = vmatpush.bf16.msra.mxu0 %v1868
    %2449 = vmatpush.bf16.msra.mxu0 %v1861
    %2450 = vmatpush.bf16.msra.mxu0 %v1854
    %2451 = vmatpush.bf16.msra.mxu0 %v1847
    %2452 = vmatpush.bf16.msra.mxu0 %v1840
    %2453 = vmatpush.bf16.msra.mxu0 %v1833
    %2454 = vmatmul.bf16.gmra.mxu0 %v850
    %v2455 = vpop.f32.mrf.mxu0
    %v2456 = vadd.f32 %v1115, %v2455
    %v2457 = vpop.f32.mrf.mxu0
    %v2458 = vadd.f32 %v1115, %v2457
    %2459 = vdwg.mxu0
    %2460 = vmatpush.bf16.msra.mxu0 %v1938
    %2461 = vmatpush.bf16.msra.mxu0 %v1931
    %2462 = vmatpush.bf16.msra.mxu0 %v1924
    %2463 = vmatpush.bf16.msra.mxu0 %v1917
    %2464 = vmatpush.bf16.msra.mxu0 %v1910
    %2465 = vmatpush.bf16.msra.mxu0 %v1903
    %2466 = vmatpush.bf16.msra.mxu0 %v1896
    %2467 = vmatpush.bf16.msra.mxu0 %v1889
    %2468 = vmatmul.bf16.gmra.mxu0 %v851
    %v2469 = vpop.f32.mrf.mxu0
    %v2470 = vadd.f32 %v2456, %v2469
    %v2471 = vpop.f32.mrf.mxu0
    %v2472 = vadd.f32 %v2458, %v2471
    %2473 = vdwg.mxu0
    %2474 = vmatpush.bf16.msra.mxu0 %v1994
    %2475 = vmatpush.bf16.msra.mxu0 %v1987
    %2476 = vmatpush.bf16.msra.mxu0 %v1980
    %2477 = vmatpush.bf16.msra.mxu0 %v1973
    %2478 = vmatpush.bf16.msra.mxu0 %v1966
    %2479 = vmatpush.bf16.msra.mxu0 %v1959
    %2480 = vmatpush.bf16.msra.mxu0 %v1952
    %2481 = vmatpush.bf16.msra.mxu0 %v1945
    %2482 = vmatmul.bf16.gmra.mxu0 %v852
    %v2483 = vpop.f32.mrf.mxu0
    %v2484 = vadd.f32 %v2470, %v2483
    %v2485 = vpop.f32.mrf.mxu0
    %v2486 = vadd.f32 %v2472, %v2485
    %2487 = vdwg.mxu0
    %2488 = vmatpush.bf16.msra.mxu0 %v2050
    %2489 = vmatpush.bf16.msra.mxu0 %v2043
    %2490 = vmatpush.bf16.msra.mxu0 %v2036
    %2491 = vmatpush.bf16.msra.mxu0 %v2029
    %2492 = vmatpush.bf16.msra.mxu0 %v2022
    %2493 = vmatpush.bf16.msra.mxu0 %v2015
    %2494 = vmatpush.bf16.msra.mxu0 %v2008
    %2495 = vmatpush.bf16.msra.mxu0 %v2001
    %2496 = vmatmul.bf16.gmra.mxu0 %v853
    %v2497 = vpop.f32.mrf.mxu0
    %v2498 = vadd.f32 %v2484, %v2497
    %v2499 = vpop.f32.mrf.mxu0
    %v2500 = vadd.f32 %v2486, %v2499
    %2501 = vdwg.mxu0
    %2502 = vmatpush.bf16.msra.mxu0 %v1883
    %2503 = vmatpush.bf16.msra.mxu0 %v1876
    %2504 = vmatpush.bf16.msra.mxu0 %v1869
    %2505 = vmatpush.bf16.msra.mxu0 %v1862
    %2506 = vmatpush.bf16.msra.mxu0 %v1855
    %2507 = vmatpush.bf16.msra.mxu0 %v1848
    %2508 = vmatpush.bf16.msra.mxu0 %v1841
    %2509 = vmatpush.bf16.msra.mxu0 %v1834
    %2510 = vmatmul.bf16.gmra.mxu0 %v850
    %v2511 = vpop.f32.mrf.mxu0
    %v2512 = vadd.f32 %v1116, %v2511
    %v2513 = vpop.f32.mrf.mxu0
    %v2514 = vadd.f32 %v1116, %v2513
    %2515 = vdwg.mxu0
    %2516 = vmatpush.bf16.msra.mxu0 %v1939
    %2517 = vmatpush.bf16.msra.mxu0 %v1932
    %2518 = vmatpush.bf16.msra.mxu0 %v1925
    %2519 = vmatpush.bf16.msra.mxu0 %v1918
    %2520 = vmatpush.bf16.msra.mxu0 %v1911
    %2521 = vmatpush.bf16.msra.mxu0 %v1904
    %2522 = vmatpush.bf16.msra.mxu0 %v1897
    %2523 = vmatpush.bf16.msra.mxu0 %v1890
    %2524 = vmatmul.bf16.gmra.mxu0 %v851
    %v2525 = vpop.f32.mrf.mxu0
    %v2526 = vadd.f32 %v2512, %v2525
    %v2527 = vpop.f32.mrf.mxu0
    %v2528 = vadd.f32 %v2514, %v2527
    %2529 = vdwg.mxu0
    %2530 = vmatpush.bf16.msra.mxu0 %v1995
    %2531 = vmatpush.bf16.msra.mxu0 %v1988
    %2532 = vmatpush.bf16.msra.mxu0 %v1981
    %2533 = vmatpush.bf16.msra.mxu0 %v1974
    %2534 = vmatpush.bf16.msra.mxu0 %v1967
    %2535 = vmatpush.bf16.msra.mxu0 %v1960
    %2536 = vmatpush.bf16.msra.mxu0 %v1953
    %2537 = vmatpush.bf16.msra.mxu0 %v1946
    %2538 = vmatmul.bf16.gmra.mxu0 %v852
    %v2539 = vpop.f32.mrf.mxu0
    %v2540 = vadd.f32 %v2526, %v2539
    %v2541 = vpop.f32.mrf.mxu0
    %v2542 = vadd.f32 %v2528, %v2541
    %2543 = vdwg.mxu0
    %2544 = vmatpush.bf16.msra.mxu0 %v2051
    %2545 = vmatpush.bf16.msra.mxu0 %v2044
    %2546 = vmatpush.bf16.msra.mxu0 %v2037
    %2547 = vmatpush.bf16.msra.mxu0 %v2030
    %2548 = vmatpush.bf16.msra.mxu0 %v2023
    %2549 = vmatpush.bf16.msra.mxu0 %v2016
    %2550 = vmatpush.bf16.msra.mxu0 %v2009
    %2551 = vmatpush.bf16.msra.mxu0 %v2002
    %2552 = vmatmul.bf16.gmra.mxu0 %v853
    %v2553 = vpop.f32.mrf.mxu0
    %v2554 = vadd.f32 %v2540, %v2553
    %v2555 = vpop.f32.mrf.mxu0
    %v2556 = vadd.f32 %v2542, %v2555
    %2557 = vdwg.mxu0
    %2558 = vmatpush.bf16.msra.mxu0 %v1884
    %2559 = vmatpush.bf16.msra.mxu0 %v1877
    %2560 = vmatpush.bf16.msra.mxu0 %v1870
    %2561 = vmatpush.bf16.msra.mxu0 %v1863
    %2562 = vmatpush.bf16.msra.mxu0 %v1856
    %2563 = vmatpush.bf16.msra.mxu0 %v1849
    %2564 = vmatpush.bf16.msra.mxu0 %v1842
    %2565 = vmatpush.bf16.msra.mxu0 %v1835
    %2566 = vmatmul.bf16.gmra.mxu0 %v850
    %v2567 = vpop.f32.mrf.mxu0
    %v2568 = vadd.f32 %v1117, %v2567
    %v2569 = vpop.f32.mrf.mxu0
    %v2570 = vadd.f32 %v1117, %v2569
    %2571 = vdwg.mxu0
    %2572 = vmatpush.bf16.msra.mxu0 %v1940
    %2573 = vmatpush.bf16.msra.mxu0 %v1933
    %2574 = vmatpush.bf16.msra.mxu0 %v1926
    %2575 = vmatpush.bf16.msra.mxu0 %v1919
    %2576 = vmatpush.bf16.msra.mxu0 %v1912
    %2577 = vmatpush.bf16.msra.mxu0 %v1905
    %2578 = vmatpush.bf16.msra.mxu0 %v1898
    %2579 = vmatpush.bf16.msra.mxu0 %v1891
    %2580 = vmatmul.bf16.gmra.mxu0 %v851
    %v2581 = vpop.f32.mrf.mxu0
    %v2582 = vadd.f32 %v2568, %v2581
    %v2583 = vpop.f32.mrf.mxu0
    %v2584 = vadd.f32 %v2570, %v2583
    %2585 = vdwg.mxu0
    %2586 = vmatpush.bf16.msra.mxu0 %v1996
    %2587 = vmatpush.bf16.msra.mxu0 %v1989
    %2588 = vmatpush.bf16.msra.mxu0 %v1982
    %2589 = vmatpush.bf16.msra.mxu0 %v1975
    %2590 = vmatpush.bf16.msra.mxu0 %v1968
    %2591 = vmatpush.bf16.msra.mxu0 %v1961
    %2592 = vmatpush.bf16.msra.mxu0 %v1954
    %2593 = vmatpush.bf16.msra.mxu0 %v1947
    %2594 = vmatmul.bf16.gmra.mxu0 %v852
    %v2595 = vpop.f32.mrf.mxu0
    %v2596 = vadd.f32 %v2582, %v2595
    %v2597 = vpop.f32.mrf.mxu0
    %v2598 = vadd.f32 %v2584, %v2597
    %2599 = vdwg.mxu0
    %2600 = vmatpush.bf16.msra.mxu0 %v2052
    %2601 = vmatpush.bf16.msra.mxu0 %v2045
    %2602 = vmatpush.bf16.msra.mxu0 %v2038
    %2603 = vmatpush.bf16.msra.mxu0 %v2031
    %2604 = vmatpush.bf16.msra.mxu0 %v2024
    %2605 = vmatpush.bf16.msra.mxu0 %v2017
    %2606 = vmatpush.bf16.msra.mxu0 %v2010
    %2607 = vmatpush.bf16.msra.mxu0 %v2003
    %2608 = vmatmul.bf16.gmra.mxu0 %v853
    %v2609 = vpop.f32.mrf.mxu0
    %v2610 = vadd.f32 %v2596, %v2609
    %v2611 = vpop.f32.mrf.mxu0
    %v2612 = vadd.f32 %v2598, %v2611
    %2613 = vdwg.mxu0
    %2614 = vmatpush.bf16.msra.mxu0 %v1885
    %2615 = vmatpush.bf16.msra.mxu0 %v1878
    %2616 = vmatpush.bf16.msra.mxu0 %v1871
    %2617 = vmatpush.bf16.msra.mxu0 %v1864
    %2618 = vmatpush.bf16.msra.mxu0 %v1857
    %2619 = vmatpush.bf16.msra.mxu0 %v1850
    %2620 = vmatpush.bf16.msra.mxu0 %v1843
    %2621 = vmatpush.bf16.msra.mxu0 %v1836
    %2622 = vmatmul.bf16.gmra.mxu0 %v850
    %v2623 = vpop.f32.mrf.mxu0
    %v2624 = vadd.f32 %v1118, %v2623
    %v2625 = vpop.f32.mrf.mxu0
    %v2626 = vadd.f32 %v1118, %v2625
    %2627 = vdwg.mxu0
    %2628 = vmatpush.bf16.msra.mxu0 %v1941
    %2629 = vmatpush.bf16.msra.mxu0 %v1934
    %2630 = vmatpush.bf16.msra.mxu0 %v1927
    %2631 = vmatpush.bf16.msra.mxu0 %v1920
    %2632 = vmatpush.bf16.msra.mxu0 %v1913
    %2633 = vmatpush.bf16.msra.mxu0 %v1906
    %2634 = vmatpush.bf16.msra.mxu0 %v1899
    %2635 = vmatpush.bf16.msra.mxu0 %v1892
    %2636 = vmatmul.bf16.gmra.mxu0 %v851
    %v2637 = vpop.f32.mrf.mxu0
    %v2638 = vadd.f32 %v2624, %v2637
    %v2639 = vpop.f32.mrf.mxu0
    %v2640 = vadd.f32 %v2626, %v2639
    %2641 = vdwg.mxu0
    %2642 = vmatpush.bf16.msra.mxu0 %v1997
    %2643 = vmatpush.bf16.msra.mxu0 %v1990
    %2644 = vmatpush.bf16.msra.mxu0 %v1983
    %2645 = vmatpush.bf16.msra.mxu0 %v1976
    %2646 = vmatpush.bf16.msra.mxu0 %v1969
    %2647 = vmatpush.bf16.msra.mxu0 %v1962
    %2648 = vmatpush.bf16.msra.mxu0 %v1955
    %2649 = vmatpush.bf16.msra.mxu0 %v1948
    %2650 = vmatmul.bf16.gmra.mxu0 %v852
    %v2651 = vpop.f32.mrf.mxu0
    %v2652 = vadd.f32 %v2638, %v2651
    %v2653 = vpop.f32.mrf.mxu0
    %v2654 = vadd.f32 %v2640, %v2653
    %2655 = vdwg.mxu0
    %2656 = vmatpush.bf16.msra.mxu0 %v2053
    %2657 = vmatpush.bf16.msra.mxu0 %v2046
    %2658 = vmatpush.bf16.msra.mxu0 %v2039
    %2659 = vmatpush.bf16.msra.mxu0 %v2032
    %2660 = vmatpush.bf16.msra.mxu0 %v2025
    %2661 = vmatpush.bf16.msra.mxu0 %v2018
    %2662 = vmatpush.bf16.msra.mxu0 %v2011
    %2663 = vmatpush.bf16.msra.mxu0 %v2004
    %2664 = vmatmul.bf16.gmra.mxu0 %v853
    %v2665 = vpop.f32.mrf.mxu0
    %v2666 = vadd.f32 %v2652, %v2665
    %v2667 = vpop.f32.mrf.mxu0
    %v2668 = vadd.f32 %v2654, %v2667
    %2669 = vdwg.mxu0
    %v2670 = vtanh.pop %v2330
    %v2671 = vtanh.pop %v2386
    %v2672 = vtanh.pop %v2442
    %v2673 = vtanh.pop %v2498
    %v2674 = vtanh.pop %v2554
    %v2675 = vtanh.pop %v2610
    %v2676 = vtanh.pop %v2666
    %v2677 = vtanh.pop %v2332
    %v2678 = vtanh.pop %v2388
    %v2679 = vtanh.pop %v2444
    %v2680 = vtanh.pop %v2500
    %v2681 = vtanh.pop %v2556
    %v2682 = vtanh.pop %v2612
    %v2683 = vtanh.pop %v2668
    %2684 = vst [vmem:[%s6] sm:$0xff] %v2670
    %2685 = vst [vmem:[%s6 + $0x8] sm:$0xff] %v2671
    %2686 = vst [vmem:[%s6 + $0x10] sm:$0xff] %v2672
    %2687 = vst [vmem:[%s6 + $0x18] sm:$0xff] %v2673
    %2688 = vst [vmem:[%s6 + $0x20] sm:$0xff] %v2674
    %2689 = vst [vmem:[%s6 + $0x28] sm:$0xff] %v2675
    %2690 = vst [vmem:[%s6 + $0x30] sm:$0xff] %v2676
    %2691 = vst [vmem:[%s6 + $0x38] sm:$0xff] %v2677
    %2692 = vst [vmem:[%s6 + $0x40] sm:$0xff] %v2678
    %2693 = vst [vmem:[%s6 + $0x48] sm:$0xff] %v2679
    %2694 = vst [vmem:[%s6 + $0x50] sm:$0xff] %v2680
    %2695 = vst [vmem:[%s6 + $0x58] sm:$0xff] %v2681
    %2696 = vst [vmem:[%s6 + $0x60] sm:$0xff] %v2682
    %2697 = vst [vmem:[%s6 + $0x68] sm:$0xff] %v2683
    // Predicated region
    $region38: #{generator_forward.1} parent=1 // pred_check
      _
    $region39: #{generator_forward.1} parent=1 // pred_check_branch
      %2699 = sbr.rel (0) target = $region41
    $region40: #{generator_forward.1} parent=1 // pred_region
      _
    $region41: #{generator_forward.1} parent=1 // pred_fallthru
      _
    // Predicated region
    $region42: #{generator_forward.1} parent=1 // pred_check
      _
    $region43: #{generator_forward.1} parent=1 // pred_check_branch
      %2701 = sbr.rel (0) target = $region45
    $region44: #{generator_forward.1} parent=1 // pred_region
      _
    $region45: #{generator_forward.1} parent=1 // pred_fallthru
      _
    %2702 = vsyncpa [#allocation3], 1
    %2703 = vsyncpa [#allocation5], 1

</llo_original>
